<compile_context>
chip_gen: v7x
topology: tpu7x:2x2x1
jax: 0.10.0
libtpu: 0.0.40
codegen_flags: <defaults>
</compile_context>

<pallas_src>
import math
import functools

import jax
import jax.numpy as jnp
from jax import lax
from jax.experimental import pallas as pl
from jax.experimental.pallas import tpu as pltpu


def _mha_kernel(xq_ref, xk_ref, xv_ref,
                wq_ref, wk_ref, wv_ref, wo_ref,
                bq_ref, bk_ref, bv_ref, bo_ref,
                out_ref, attn_ref, ctx_ref,
                *, num_heads: int, head_dim: int, scale_inv: float):
    """One batch element per grid step."""
    # Contract last dim of lhs with last dim of rhs == x @ W.T, no transpose op.
    dn = (((1,), (1,)), ((), ()))

    x_q = xq_ref[0]          # (S, H)
    x_k = xk_ref[0]
    x_v = xv_ref[0]

    # Full-width projections, once per batch element (MXU output dim = H).
    # Scale 1/sqrt(head_dim) folded into the q projection (algebraically
    # identical to scaling the (S, S) score tile, but on the smaller tensor).
    qp = (lax.dot_general(x_q, wq_ref[...], dn,
                          preferred_element_type=jnp.float32)
          + bq_ref[...]) * scale_inv                                   # (S, H)
    kp = lax.dot_general(x_k, wk_ref[...], dn,
                         preferred_element_type=jnp.float32) + bk_ref[...]
    vp = lax.dot_general(x_v, wv_ref[...], dn,
                         preferred_element_type=jnp.float32) + bv_ref[...]

    # TODO(synk): optional `mask` argument (mask=None path only) not wired in.

    # Static head loop (fully unrolled; num_heads is a trace-time constant).
    for h in range(num_heads):
        sl = slice(h * head_dim, (h + 1) * head_dim)
        qh = qp[:, sl]                                                 # (S, hd)
        kh = kp[:, sl]
        vh = vp[:, sl]

        # scores = (q @ k.T) / sqrt(hd)  (scale already applied to qh).
        scores = lax.dot_general(qh, kh, dn,
                                 preferred_element_type=jnp.float32)  # (S, S)

        # Numerically-stable softmax; divide as reciprocal * multiply.
        # Kept exact (approx=False): returned weights must match f32 reference.
        m = jnp.max(scores, axis=-1, keepdims=True)
        e = jnp.exp(scores - m)
        denom = jnp.sum(e, axis=-1, keepdims=True)
        w = e * pl.reciprocal(denom, approx=False)
        attn_ref[0, h] = w.astype(attn_ref.dtype)

        # Head context into its column slab of the (S, H) context scratch.
        ctx_ref[:, sl] = jnp.dot(w, vh, preferred_element_type=jnp.float32)

    # Single full-contraction output projection per batch element.
    out = lax.dot_general(ctx_ref[...], wo_ref[...], dn,
                          preferred_element_type=jnp.float32) + bo_ref[...]
    out_ref[0] = out.astype(out_ref.dtype)


def multi_head_attention(q, k, v, params, *, num_heads: int):
    B, S, H = q.shape
    assert H % num_heads == 0
    hd = H // num_heads

    wq, bq, wk, bk, wv, bv, wo, bo = params

    # Biases as (1, H) row blocks (broadcast over S inside the kernel).
    bq2 = bq.reshape(1, H)
    bk2 = bk.reshape(1, H)
    bv2 = bv.reshape(1, H)
    bo2 = bo.reshape(1, H)

    x_spec = pl.BlockSpec((1, S, H), lambda b: (b, 0, 0))
    w_spec = pl.BlockSpec((H, H), lambda b: (0, 0))   # constant -> DMA'd once, resident
    b_spec = pl.BlockSpec((1, H), lambda b: (0, 0))

    kernel = functools.partial(_mha_kernel, num_heads=num_heads, head_dim=hd,
                               scale_inv=1.0 / math.sqrt(hd))

    out, attn = pl.pallas_call(
        kernel,
        out_shape=(
            jax.ShapeDtypeStruct((B, S, H), q.dtype),
            # Kept f32 to match the PyTorch module's returned softmax weights.
            jax.ShapeDtypeStruct((B, num_heads, S, S), jnp.float32),
        ),
        grid_spec=pltpu.PrefetchScalarGridSpec(
            num_scalar_prefetch=0,
            grid=(B,),
            in_specs=[x_spec, x_spec, x_spec,
                      w_spec, w_spec, w_spec, w_spec,
                      b_spec, b_spec, b_spec, b_spec],
            out_specs=[
                pl.BlockSpec((1, S, H), lambda b: (b, 0, 0)),
                pl.BlockSpec((1, num_heads, S, S), lambda b: (b, 0, 0, 0)),
            ],
            scratch_shapes=[pltpu.VMEM((S, H), jnp.float32)],   # context scratch
        ),
        compiler_params=pltpu.CompilerParams(
            dimension_semantics=("parallel",),
            vmem_limit_bytes=64 * 1024 * 1024,
        ),
    )(q, k, v, wq, wk, wv, wo, bq2, bk2, bv2, bo2)
    return out, attn


def _reference(q, k, v, params, *, num_heads: int):
    """Pure-JAX reference mirroring the PyTorch forward."""
    B, S, H = q.shape
    hd = H // num_heads
    wq, bq, wk, bk, wv, bv, wo, bo = params
    scale = math.sqrt(hd)

    def lin(x, w, b):
        return x @ w.T + b

    def split(x):
        return x.reshape(B, S, num_heads, hd).transpose(0, 2, 1, 3)  # (B, nh, S, hd)

    qh = split(lin(q, wq, bq))
    kh = split(lin(k, wk, bk))
    vh = split(lin(v, wv, bv))
    scores = jnp.einsum("bhqd,bhkd->bhqk", qh, kh) / scale
    w = jax.nn.softmax(scores, axis=-1)
    ctx = jnp.einsum("bhqk,bhkd->bhqd", w, vh)
    ctx = ctx.transpose(0, 2, 1, 3).reshape(B, S, H)
    return lin(ctx, wo, bo), w


if __name__ == "__main__":
    B, S, H, NH = 2, 8, 32, 4
    key = jax.random.PRNGKey(0)
    keys = jax.random.split(key, 12)

    q = jax.random.normal(keys[0], (B, S, H), jnp.float32)
    k = jax.random.normal(keys[1], (B, S, H), jnp.float32)
    v = jax.random.normal(keys[2], (B, S, H), jnp.float32)

    # Deterministic parameter init (PyTorch nn.Linear shapes: W (out,in), b (out,))
    lim = 1.0 / math.sqrt(H)
    def init_w(kk):
        return jax.random.uniform(kk, (H, H), jnp.float32, -lim, lim)
    def init_b(kk):
        return jax.random.uniform(kk, (H,), jnp.float32, -lim, lim)

    params = (init_w(keys[3]), init_b(keys[4]),
              init_w(keys[5]), init_b(keys[6]),
              init_w(keys[7]), init_b(keys[8]),
              init_w(keys[9]), init_b(keys[10]))

    out, attn = multi_head_attention(q, k, v, params, num_heads=NH)
    jax.block_until_ready((out, attn))

    ref_out, ref_attn = _reference(q, k, v, params, num_heads=NH)
    assert jnp.allclose(out, ref_out, atol=1e-4, rtol=1e-4)
    assert jnp.allclose(attn, ref_attn, atol=1e-4, rtol=1e-4)

    print("KERNEL_OK")
</pallas_src>

<mosaic_0001>
module attributes {stable_mosaic.version = 11 : i64} {
  func.func @_mha_kernel(%arg0: i32, %arg1: memref<1x8x32xf32, #tpu.memory_space<vmem>>, %arg2: memref<1x8x32xf32, #tpu.memory_space<vmem>>, %arg3: memref<1x8x32xf32, #tpu.memory_space<vmem>>, %arg4: memref<32x32xf32, #tpu.memory_space<vmem>>, %arg5: memref<32x32xf32, #tpu.memory_space<vmem>>, %arg6: memref<32x32xf32, #tpu.memory_space<vmem>>, %arg7: memref<32x32xf32, #tpu.memory_space<vmem>>, %arg8: memref<1x32xf32, #tpu.memory_space<vmem>>, %arg9: memref<1x32xf32, #tpu.memory_space<vmem>>, %arg10: memref<1x32xf32, #tpu.memory_space<vmem>>, %arg11: memref<1x32xf32, #tpu.memory_space<vmem>>, %arg12: memref<1x8x32xf32, #tpu.memory_space<vmem>>, %arg13: memref<1x4x8x8xf32, #tpu.memory_space<vmem>>, %arg14: memref<8x32xf32, #tpu.memory_space<vmem>>) attributes {dimension_semantics = [#tpu.dimension_semantics<parallel>], iteration_bounds = array<i64: 2>, scalar_prefetch = 0 : i64, scratch_operands = 1 : i64, tpu.core_type = #tpu.core_type<tc>, window_params = [{transform_indices = @transform_0, window_bounds = array<i64: 1, 8, 32>}, {transform_indices = @transform_1, window_bounds = array<i64: 1, 8, 32>}, {transform_indices = @transform_2, window_bounds = array<i64: 1, 8, 32>}, {pipeline_mode = #tpu.pipeline_mode<synchronous>, transform_indices = @transform_3, window_bounds = array<i64: 32, 32>}, {pipeline_mode = #tpu.pipeline_mode<synchronous>, transform_indices = @transform_4, window_bounds = array<i64: 32, 32>}, {pipeline_mode = #tpu.pipeline_mode<synchronous>, transform_indices = @transform_5, window_bounds = array<i64: 32, 32>}, {pipeline_mode = #tpu.pipeline_mode<synchronous>, transform_indices = @transform_6, window_bounds = array<i64: 32, 32>}, {pipeline_mode = #tpu.pipeline_mode<synchronous>, transform_indices = @transform_7, window_bounds = array<i64: 1, 32>}, {pipeline_mode = #tpu.pipeline_mode<synchronous>, transform_indices = @transform_8, window_bounds = array<i64: 1, 32>}, {pipeline_mode = #tpu.pipeline_mode<synchronous>, transform_indices = @transform_9, window_bounds = array<i64: 1, 32>}, {pipeline_mode = #tpu.pipeline_mode<synchronous>, transform_indices = @transform_10, window_bounds = array<i64: 1, 32>}, {transform_indices = @transform_11, window_bounds = array<i64: 1, 8, 32>}, {transform_indices = @transform_12, window_bounds = array<i64: 1, 4, 8, 8>}]} {
    %c0 = arith.constant 0 : index
    %c0_0 = arith.constant 0 : index
    %c0_1 = arith.constant 0 : index
    %0 = vector.load %arg1[%c0, %c0_0, %c0_1] : memref<1x8x32xf32, #tpu.memory_space<vmem>>, vector<1x8x32xf32>
    %1 = vector.shape_cast %0 : vector<1x8x32xf32> to vector<8x32xf32>
    %c0_2 = arith.constant 0 : index
    %c0_3 = arith.constant 0 : index
    %c0_4 = arith.constant 0 : index
    %2 = vector.load %arg2[%c0_2, %c0_3, %c0_4] : memref<1x8x32xf32, #tpu.memory_space<vmem>>, vector<1x8x32xf32>
    %3 = vector.shape_cast %2 : vector<1x8x32xf32> to vector<8x32xf32>
    %c0_5 = arith.constant 0 : index
    %c0_6 = arith.constant 0 : index
    %c0_7 = arith.constant 0 : index
    %4 = vector.load %arg3[%c0_5, %c0_6, %c0_7] : memref<1x8x32xf32, #tpu.memory_space<vmem>>, vector<1x8x32xf32>
    %5 = vector.shape_cast %4 : vector<1x8x32xf32> to vector<8x32xf32>
    %c0_8 = arith.constant 0 : index
    %c0_9 = arith.constant 0 : index
    %6 = vector.load %arg4[%c0_8, %c0_9] : memref<32x32xf32, #tpu.memory_space<vmem>>, vector<32x32xf32>
    %cst = arith.constant dense<0.000000e+00> : vector<8x32xf32>
    %7 = tpu.matmul %1, %6, %cst {dimension_numbers = #tpu.dot_dimension_numbers<[1], [1], [0], [0], [0, 0, 1, 0], [], []>} : vector<8x32xf32>, vector<32x32xf32>, vector<8x32xf32> -> vector<8x32xf32>
    %c0_10 = arith.constant 0 : index
    %c0_11 = arith.constant 0 : index
    %8 = vector.load %arg8[%c0_10, %c0_11] : memref<1x32xf32, #tpu.memory_space<vmem>>, vector<1x32xf32>
    %9 = vector.broadcast %8 : vector<1x32xf32> to vector<8x32xf32>
    %10 = arith.addf %7, %9 : vector<8x32xf32>
    %cst_12 = arith.constant 0.353553385 : f32
    %11 = vector.broadcast %cst_12 : f32 to vector<8x32xf32>
    %12 = arith.mulf %10, %11 : vector<8x32xf32>
    %c0_13 = arith.constant 0 : index
    %c0_14 = arith.constant 0 : index
    %13 = vector.load %arg5[%c0_13, %c0_14] : memref<32x32xf32, #tpu.memory_space<vmem>>, vector<32x32xf32>
    %cst_15 = arith.constant dense<0.000000e+00> : vector<8x32xf32>
    %14 = tpu.matmul %3, %13, %cst_15 {dimension_numbers = #tpu.dot_dimension_numbers<[1], [1], [0], [0], [0, 0, 1, 0], [], []>} : vector<8x32xf32>, vector<32x32xf32>, vector<8x32xf32> -> vector<8x32xf32>
    %c0_16 = arith.constant 0 : index
    %c0_17 = arith.constant 0 : index
    %15 = vector.load %arg9[%c0_16, %c0_17] : memref<1x32xf32, #tpu.memory_space<vmem>>, vector<1x32xf32>
    %16 = vector.broadcast %15 : vector<1x32xf32> to vector<8x32xf32>
    %17 = arith.addf %14, %16 : vector<8x32xf32>
    %c0_18 = arith.constant 0 : index
    %c0_19 = arith.constant 0 : index
    %18 = vector.load %arg6[%c0_18, %c0_19] : memref<32x32xf32, #tpu.memory_space<vmem>>, vector<32x32xf32>
    %cst_20 = arith.constant dense<0.000000e+00> : vector<8x32xf32>
    %19 = tpu.matmul %5, %18, %cst_20 {dimension_numbers = #tpu.dot_dimension_numbers<[1], [1], [0], [0], [0, 0, 1, 0], [], []>} : vector<8x32xf32>, vector<32x32xf32>, vector<8x32xf32> -> vector<8x32xf32>
    %c0_21 = arith.constant 0 : index
    %c0_22 = arith.constant 0 : index
    %20 = vector.load %arg10[%c0_21, %c0_22] : memref<1x32xf32, #tpu.memory_space<vmem>>, vector<1x32xf32>
    %21 = vector.broadcast %20 : vector<1x32xf32> to vector<8x32xf32>
    %22 = arith.addf %19, %21 : vector<8x32xf32>
    %23 = vector.extract_strided_slice %12 {offsets = [0, 0], sizes = [8, 8], strides = [1, 1]} : vector<8x32xf32> to vector<8x8xf32>
    %24 = vector.extract_strided_slice %17 {offsets = [0, 0], sizes = [8, 8], strides = [1, 1]} : vector<8x32xf32> to vector<8x8xf32>
    %25 = vector.extract_strided_slice %22 {offsets = [0, 0], sizes = [8, 8], strides = [1, 1]} : vector<8x32xf32> to vector<8x8xf32>
    %cst_23 = arith.constant dense<0.000000e+00> : vector<8x8xf32>
    %26 = tpu.matmul %23, %24, %cst_23 {dimension_numbers = #tpu.dot_dimension_numbers<[1], [1], [0], [0], [0, 0, 1, 0], [], []>} : vector<8x8xf32>, vector<8x8xf32>, vector<8x8xf32> -> vector<8x8xf32>
    %cst_24 = arith.constant dense<0xFF800000> : vector<8xf32>
    %27 = vector.multi_reduction <maximumf>, %26, %cst_24 [1] : vector<8x8xf32> to vector<8xf32>
    %28 = vector.shape_cast %27 : vector<8xf32> to vector<8x1xf32>
    %29 = vector.broadcast %28 : vector<8x1xf32> to vector<8x8xf32>
    %30 = arith.subf %26, %29 : vector<8x8xf32>
    %31 = math.exp %30 : vector<8x8xf32>
    %cst_25 = arith.constant dense<0.000000e+00> : vector<8xf32>
    %32 = vector.multi_reduction <add>, %31, %cst_25 [1] : vector<8x8xf32> to vector<8xf32>
    %33 = vector.shape_cast %32 : vector<8xf32> to vector<8x1xf32>
    %34 = tpu.reciprocal %33 : vector<8x1xf32> -> vector<8x1xf32>
    %35 = vector.broadcast %34 : vector<8x1xf32> to vector<8x8xf32>
    %36 = arith.mulf %31, %35 : vector<8x8xf32>
    %c0_26 = arith.constant 0 : index
    %c0_27 = arith.constant 0 : index
    %c0_28 = arith.constant 0 : index
    %c0_29 = arith.constant 0 : index
    %37 = vector.load %arg13[%c0_26, %c0_27, %c0_28, %c0_29] : memref<1x4x8x8xf32, #tpu.memory_space<vmem>>, vector<1x1x8x8xf32>
    %38 = vector.shape_cast %37 : vector<1x1x8x8xf32> to vector<8x8xf32>
    %39 = vector.shape_cast %36 : vector<8x8xf32> to vector<1x1x8x8xf32>
    tpu.vector_store %arg13[%c0_26, %c0_27, %c0_28, %c0_29], %39 {strides = array<i32>} : memref<1x4x8x8xf32, #tpu.memory_space<vmem>>, vector<1x1x8x8xf32>,
    %cst_30 = arith.constant dense<0.000000e+00> : vector<8x8xf32>
    %40 = tpu.matmul %36, %25, %cst_30 {dimension_numbers = #tpu.dot_dimension_numbers<[1], [0], [0], [1], [0, 0, 1, 1], [], []>} : vector<8x8xf32>, vector<8x8xf32>, vector<8x8xf32> -> vector<8x8xf32>
    %c0_31 = arith.constant 0 : index
    %c0_32 = arith.constant 0 : index
    %41 = vector.load %arg14[%c0_31, %c0_32] : memref<8x32xf32, #tpu.memory_space<vmem>>, vector<8x8xf32>
    tpu.vector_store %arg14[%c0_31, %c0_32], %40 {strides = array<i32>} : memref<8x32xf32, #tpu.memory_space<vmem>>, vector<8x8xf32>,
    %42 = vector.extract_strided_slice %12 {offsets = [0, 8], sizes = [8, 8], strides = [1, 1]} : vector<8x32xf32> to vector<8x8xf32>
    %43 = vector.extract_strided_slice %17 {offsets = [0, 8], sizes = [8, 8], strides = [1, 1]} : vector<8x32xf32> to vector<8x8xf32>
    %44 = vector.extract_strided_slice %22 {offsets = [0, 8], sizes = [8, 8], strides = [1, 1]} : vector<8x32xf32> to vector<8x8xf32>
    %cst_33 = arith.constant dense<0.000000e+00> : vector<8x8xf32>
    %45 = tpu.matmul %42, %43, %cst_33 {dimension_numbers = #tpu.dot_dimension_numbers<[1], [1], [0], [0], [0, 0, 1, 0], [], []>} : vector<8x8xf32>, vector<8x8xf32>, vector<8x8xf32> -> vector<8x8xf32>
    %cst_34 = arith.constant dense<0xFF800000> : vector<8xf32>
    %46 = vector.multi_reduction <maximumf>, %45, %cst_34 [1] : vector<8x8xf32> to vector<8xf32>
    %47 = vector.shape_cast %46 : vector<8xf32> to vector<8x1xf32>
    %48 = vector.broadcast %47 : vector<8x1xf32> to vector<8x8xf32>
    %49 = arith.subf %45, %48 : vector<8x8xf32>
    %50 = math.exp %49 : vector<8x8xf32>
    %cst_35 = arith.constant dense<0.000000e+00> : vector<8xf32>
    %51 = vector.multi_reduction <add>, %50, %cst_35 [1] : vector<8x8xf32> to vector<8xf32>
    %52 = vector.shape_cast %51 : vector<8xf32> to vector<8x1xf32>
    %53 = tpu.reciprocal %52 : vector<8x1xf32> -> vector<8x1xf32>
    %54 = vector.broadcast %53 : vector<8x1xf32> to vector<8x8xf32>
    %55 = arith.mulf %50, %54 : vector<8x8xf32>
    %c0_36 = arith.constant 0 : index
    %c1 = arith.constant 1 : index
    %c0_37 = arith.constant 0 : index
    %c0_38 = arith.constant 0 : index
    %56 = vector.load %arg13[%c0_36, %c1, %c0_37, %c0_38] : memref<1x4x8x8xf32, #tpu.memory_space<vmem>>, vector<1x1x8x8xf32>
    %57 = vector.shape_cast %56 : vector<1x1x8x8xf32> to vector<8x8xf32>
    %58 = vector.shape_cast %55 : vector<8x8xf32> to vector<1x1x8x8xf32>
    tpu.vector_store %arg13[%c0_36, %c1, %c0_37, %c0_38], %58 {strides = array<i32>} : memref<1x4x8x8xf32, #tpu.memory_space<vmem>>, vector<1x1x8x8xf32>,
    %cst_39 = arith.constant dense<0.000000e+00> : vector<8x8xf32>
    %59 = tpu.matmul %55, %44, %cst_39 {dimension_numbers = #tpu.dot_dimension_numbers<[1], [0], [0], [1], [0, 0, 1, 1], [], []>} : vector<8x8xf32>, vector<8x8xf32>, vector<8x8xf32> -> vector<8x8xf32>
    %c0_40 = arith.constant 0 : index
    %c8 = arith.constant 8 : index
    %60 = vector.load %arg14[%c0_40, %c8] : memref<8x32xf32, #tpu.memory_space<vmem>>, vector<8x8xf32>
    tpu.vector_store %arg14[%c0_40, %c8], %59 {strides = array<i32>} : memref<8x32xf32, #tpu.memory_space<vmem>>, vector<8x8xf32>,
    %61 = vector.extract_strided_slice %12 {offsets = [0, 16], sizes = [8, 8], strides = [1, 1]} : vector<8x32xf32> to vector<8x8xf32>
    %62 = vector.extract_strided_slice %17 {offsets = [0, 16], sizes = [8, 8], strides = [1, 1]} : vector<8x32xf32> to vector<8x8xf32>
    %63 = vector.extract_strided_slice %22 {offsets = [0, 16], sizes = [8, 8], strides = [1, 1]} : vector<8x32xf32> to vector<8x8xf32>
    %cst_41 = arith.constant dense<0.000000e+00> : vector<8x8xf32>
    %64 = tpu.matmul %61, %62, %cst_41 {dimension_numbers = #tpu.dot_dimension_numbers<[1], [1], [0], [0], [0, 0, 1, 0], [], []>} : vector<8x8xf32>, vector<8x8xf32>, vector<8x8xf32> -> vector<8x8xf32>
    %cst_42 = arith.constant dense<0xFF800000> : vector<8xf32>
    %65 = vector.multi_reduction <maximumf>, %64, %cst_42 [1] : vector<8x8xf32> to vector<8xf32>
    %66 = vector.shape_cast %65 : vector<8xf32> to vector<8x1xf32>
    %67 = vector.broadcast %66 : vector<8x1xf32> to vector<8x8xf32>
    %68 = arith.subf %64, %67 : vector<8x8xf32>
    %69 = math.exp %68 : vector<8x8xf32>
    %cst_43 = arith.constant dense<0.000000e+00> : vector<8xf32>
    %70 = vector.multi_reduction <add>, %69, %cst_43 [1] : vector<8x8xf32> to vector<8xf32>
    %71 = vector.shape_cast %70 : vector<8xf32> to vector<8x1xf32>
    %72 = tpu.reciprocal %71 : vector<8x1xf32> -> vector<8x1xf32>
    %73 = vector.broadcast %72 : vector<8x1xf32> to vector<8x8xf32>
    %74 = arith.mulf %69, %73 : vector<8x8xf32>
    %c0_44 = arith.constant 0 : index
    %c2 = arith.constant 2 : index
    %c0_45 = arith.constant 0 : index
    %c0_46 = arith.constant 0 : index
    %75 = vector.load %arg13[%c0_44, %c2, %c0_45, %c0_46] : memref<1x4x8x8xf32, #tpu.memory_space<vmem>>, vector<1x1x8x8xf32>
    %76 = vector.shape_cast %75 : vector<1x1x8x8xf32> to vector<8x8xf32>
    %77 = vector.shape_cast %74 : vector<8x8xf32> to vector<1x1x8x8xf32>
    tpu.vector_store %arg13[%c0_44, %c2, %c0_45, %c0_46], %77 {strides = array<i32>} : memref<1x4x8x8xf32, #tpu.memory_space<vmem>>, vector<1x1x8x8xf32>,
    %cst_47 = arith.constant dense<0.000000e+00> : vector<8x8xf32>
    %78 = tpu.matmul %74, %63, %cst_47 {dimension_numbers = #tpu.dot_dimension_numbers<[1], [0], [0], [1], [0, 0, 1, 1], [], []>} : vector<8x8xf32>, vector<8x8xf32>, vector<8x8xf32> -> vector<8x8xf32>
    %c0_48 = arith.constant 0 : index
    %c16 = arith.constant 16 : index
    %79 = vector.load %arg14[%c0_48, %c16] : memref<8x32xf32, #tpu.memory_space<vmem>>, vector<8x8xf32>
    tpu.vector_store %arg14[%c0_48, %c16], %78 {strides = array<i32>} : memref<8x32xf32, #tpu.memory_space<vmem>>, vector<8x8xf32>,
    %80 = vector.extract_strided_slice %12 {offsets = [0, 24], sizes = [8, 8], strides = [1, 1]} : vector<8x32xf32> to vector<8x8xf32>
    %81 = vector.extract_strided_slice %17 {offsets = [0, 24], sizes = [8, 8], strides = [1, 1]} : vector<8x32xf32> to vector<8x8xf32>
    %82 = vector.extract_strided_slice %22 {offsets = [0, 24], sizes = [8, 8], strides = [1, 1]} : vector<8x32xf32> to vector<8x8xf32>
    %cst_49 = arith.constant dense<0.000000e+00> : vector<8x8xf32>
    %83 = tpu.matmul %80, %81, %cst_49 {dimension_numbers = #tpu.dot_dimension_numbers<[1], [1], [0], [0], [0, 0, 1, 0], [], []>} : vector<8x8xf32>, vector<8x8xf32>, vector<8x8xf32> -> vector<8x8xf32>
    %cst_50 = arith.constant dense<0xFF800000> : vector<8xf32>
    %84 = vector.multi_reduction <maximumf>, %83, %cst_50 [1] : vector<8x8xf32> to vector<8xf32>
    %85 = vector.shape_cast %84 : vector<8xf32> to vector<8x1xf32>
    %86 = vector.broadcast %85 : vector<8x1xf32> to vector<8x8xf32>
    %87 = arith.subf %83, %86 : vector<8x8xf32>
    %88 = math.exp %87 : vector<8x8xf32>
    %cst_51 = arith.constant dense<0.000000e+00> : vector<8xf32>
    %89 = vector.multi_reduction <add>, %88, %cst_51 [1] : vector<8x8xf32> to vector<8xf32>
    %90 = vector.shape_cast %89 : vector<8xf32> to vector<8x1xf32>
    %91 = tpu.reciprocal %90 : vector<8x1xf32> -> vector<8x1xf32>
    %92 = vector.broadcast %91 : vector<8x1xf32> to vector<8x8xf32>
    %93 = arith.mulf %88, %92 : vector<8x8xf32>
    %c0_52 = arith.constant 0 : index
    %c3 = arith.constant 3 : index
    %c0_53 = arith.constant 0 : index
    %c0_54 = arith.constant 0 : index
    %94 = vector.load %arg13[%c0_52, %c3, %c0_53, %c0_54] : memref<1x4x8x8xf32, #tpu.memory_space<vmem>>, vector<1x1x8x8xf32>
    %95 = vector.shape_cast %94 : vector<1x1x8x8xf32> to vector<8x8xf32>
    %96 = vector.shape_cast %93 : vector<8x8xf32> to vector<1x1x8x8xf32>
    tpu.vector_store %arg13[%c0_52, %c3, %c0_53, %c0_54], %96 {strides = array<i32>} : memref<1x4x8x8xf32, #tpu.memory_space<vmem>>, vector<1x1x8x8xf32>,
    %cst_55 = arith.constant dense<0.000000e+00> : vector<8x8xf32>
    %97 = tpu.matmul %93, %82, %cst_55 {dimension_numbers = #tpu.dot_dimension_numbers<[1], [0], [0], [1], [0, 0, 1, 1], [], []>} : vector<8x8xf32>, vector<8x8xf32>, vector<8x8xf32> -> vector<8x8xf32>
    %c0_56 = arith.constant 0 : index
    %c24 = arith.constant 24 : index
    %98 = vector.load %arg14[%c0_56, %c24] : memref<8x32xf32, #tpu.memory_space<vmem>>, vector<8x8xf32>
    tpu.vector_store %arg14[%c0_56, %c24], %97 {strides = array<i32>} : memref<8x32xf32, #tpu.memory_space<vmem>>, vector<8x8xf32>,
    %c0_57 = arith.constant 0 : index
    %c0_58 = arith.constant 0 : index
    %99 = vector.load %arg14[%c0_57, %c0_58] : memref<8x32xf32, #tpu.memory_space<vmem>>, vector<8x32xf32>
    %c0_59 = arith.constant 0 : index
    %c0_60 = arith.constant 0 : index
    %100 = vector.load %arg7[%c0_59, %c0_60] : memref<32x32xf32, #tpu.memory_space<vmem>>, vector<32x32xf32>
    %cst_61 = arith.constant dense<0.000000e+00> : vector<8x32xf32>
    %101 = tpu.matmul %99, %100, %cst_61 {dimension_numbers = #tpu.dot_dimension_numbers<[1], [1], [0], [0], [0, 0, 1, 0], [], []>} : vector<8x32xf32>, vector<32x32xf32>, vector<8x32xf32> -> vector<8x32xf32>
    %c0_62 = arith.constant 0 : index
    %c0_63 = arith.constant 0 : index
    %102 = vector.load %arg11[%c0_62, %c0_63] : memref<1x32xf32, #tpu.memory_space<vmem>>, vector<1x32xf32>
    %103 = vector.broadcast %102 : vector<1x32xf32> to vector<8x32xf32>
    %104 = arith.addf %101, %103 : vector<8x32xf32>
    %c0_64 = arith.constant 0 : index
    %c0_65 = arith.constant 0 : index
    %c0_66 = arith.constant 0 : index
    %105 = vector.load %arg12[%c0_64, %c0_65, %c0_66] : memref<1x8x32xf32, #tpu.memory_space<vmem>>, vector<1x8x32xf32>
    %106 = vector.shape_cast %105 : vector<1x8x32xf32> to vector<8x32xf32>
    %107 = vector.shape_cast %104 : vector<8x32xf32> to vector<1x8x32xf32>
    tpu.vector_store %arg12[%c0_64, %c0_65, %c0_66], %107 {strides = array<i32>} : memref<1x8x32xf32, #tpu.memory_space<vmem>>, vector<1x8x32xf32>,
    return
  }
  func.func @transform_0(%arg0: i32) -> (i32, i32, i32) {
    %c0_i32 = arith.constant 0 : i32
    %c0_i32_0 = arith.constant 0 : i32
    %c0_i32_1 = arith.constant 0 : i32
    return %arg0, %c0_i32, %c0_i32_0 : i32, i32, i32
  }
  func.func @transform_1(%arg0: i32) -> (i32, i32, i32) {
    %c0_i32 = arith.constant 0 : i32
    %c0_i32_0 = arith.constant 0 : i32
    %c0_i32_1 = arith.constant 0 : i32
    return %arg0, %c0_i32, %c0_i32_0 : i32, i32, i32
  }
  func.func @transform_2(%arg0: i32) -> (i32, i32, i32) {
    %c0_i32 = arith.constant 0 : i32
    %c0_i32_0 = arith.constant 0 : i32
    %c0_i32_1 = arith.constant 0 : i32
    return %arg0, %c0_i32, %c0_i32_0 : i32, i32, i32
  }
  func.func @transform_3(%arg0: i32) -> (i32, i32) {
    %c0_i32 = arith.constant 0 : i32
    %c0_i32_0 = arith.constant 0 : i32
    %c0_i32_1 = arith.constant 0 : i32
    return %c0_i32, %c0_i32_0 : i32, i32
  }
  func.func @transform_4(%arg0: i32) -> (i32, i32) {
    %c0_i32 = arith.constant 0 : i32
    %c0_i32_0 = arith.constant 0 : i32
    %c0_i32_1 = arith.constant 0 : i32
    return %c0_i32, %c0_i32_0 : i32, i32
  }
  func.func @transform_5(%arg0: i32) -> (i32, i32) {
    %c0_i32 = arith.constant 0 : i32
    %c0_i32_0 = arith.constant 0 : i32
    %c0_i32_1 = arith.constant 0 : i32
    return %c0_i32, %c0_i32_0 : i32, i32
  }
  func.func @transform_6(%arg0: i32) -> (i32, i32) {
    %c0_i32 = arith.constant 0 : i32
    %c0_i32_0 = arith.constant 0 : i32
    %c0_i32_1 = arith.constant 0 : i32
    return %c0_i32, %c0_i32_0 : i32, i32
  }
  func.func @transform_7(%arg0: i32) -> (i32, i32) {
    %c0_i32 = arith.constant 0 : i32
    %c0_i32_0 = arith.constant 0 : i32
    %c0_i32_1 = arith.constant 0 : i32
    return %c0_i32, %c0_i32_0 : i32, i32
  }
  func.func @transform_8(%arg0: i32) -> (i32, i32) {
    %c0_i32 = arith.constant 0 : i32
    %c0_i32_0 = arith.constant 0 : i32
    %c0_i32_1 = arith.constant 0 : i32
    return %c0_i32, %c0_i32_0 : i32, i32
  }
  func.func @transform_9(%arg0: i32) -> (i32, i32) {
    %c0_i32 = arith.constant 0 : i32
    %c0_i32_0 = arith.constant 0 : i32
    %c0_i32_1 = arith.constant 0 : i32
    return %c0_i32, %c0_i32_0 : i32, i32
  }
  func.func @transform_10(%arg0: i32) -> (i32, i32) {
    %c0_i32 = arith.constant 0 : i32
    %c0_i32_0 = arith.constant 0 : i32
    %c0_i32_1 = arith.constant 0 : i32
    return %c0_i32, %c0_i32_0 : i32, i32
  }
  func.func @transform_11(%arg0: i32) -> (i32, i32, i32) {
    %c0_i32 = arith.constant 0 : i32
    %c0_i32_0 = arith.constant 0 : i32
    %c0_i32_1 = arith.constant 0 : i32
    return %arg0, %c0_i32, %c0_i32_0 : i32, i32, i32
  }
  func.func @transform_12(%arg0: i32) -> (i32, i32, i32, i32) {
    %c0_i32 = arith.constant 0 : i32
    %c0_i32_0 = arith.constant 0 : i32
    %c0_i32_1 = arith.constant 0 : i32
    %c0_i32_2 = arith.constant 0 : i32
    return %arg0, %c0_i32, %c0_i32_0, %c0_i32_1 : i32, i32, i32, i32
  }
}

</mosaic_0001>

<llo_original>
// kernel: tpu_custom_call.1
$region0: #{tpu_custom_call.1}
  #allocation0 [shape = 'u32[]', space=smem, size = 0x4, offset = 0x4, fixed_abs, tag = 'smem constant byte address 0x4 - core index']
  #allocation1 [shape = 'u32[144,128]{1,0:T(1,128)}', space=vmem, size = 0x12000, scoped, tag = 'internal scratch']
  #allocation2 [shape = 'f32[8,32]{1,0:T(8,128)}', space=vmem, size = 0x1000, scoped, tag = 'scratch operand']
  %s0 = inlined_call_operand.hbm [shape: f32[2,8,32], index: 0, kind: input, shape index: {}]
  %s1 = inlined_call_operand.hbm [shape: f32[2,8,32], index: 1, kind: input, shape index: {}]
  %s2 = inlined_call_operand.hbm [shape: f32[2,8,32], index: 2, kind: input, shape index: {}]
  %s3 = inlined_call_operand.hbm [shape: f32[32,32], index: 3, kind: input, shape index: {}]
  %s4 = inlined_call_operand.hbm [shape: f32[32,32], index: 4, kind: input, shape index: {}]
  %s5 = inlined_call_operand.hbm [shape: f32[32,32], index: 5, kind: input, shape index: {}]
  %s6 = inlined_call_operand.hbm [shape: f32[32,32], index: 6, kind: input, shape index: {}]
  %s7 = inlined_call_operand.hbm [shape: f32[1,32], index: 7, kind: input, shape index: {}]
  %s8 = inlined_call_operand.hbm [shape: f32[1,32], index: 8, kind: input, shape index: {}]
  %s9 = inlined_call_operand.hbm [shape: f32[1,32], index: 9, kind: input, shape index: {}]
  %s10 = inlined_call_operand.hbm [shape: f32[1,32], index: 10, kind: input, shape index: {}]
  %s11 = inlined_call_operand.hbm [shape: f32[2,8,32], index: 11, kind: output, shape index: {0}]
  %s12 = inlined_call_operand.hbm [shape: f32[2,4,8,8], index: 12, kind: output, shape index: {1}]
  %13 = xla_tuple %s11, %s12
  %s14 = sld [smem:[#allocation0]]
  $region129: #{tpu_custom_call.1} parent=0
    _
  %s16 = ssub.s32 1, %s14
  %s17 = scalar_select 0, %s16, %s14
  $region1: #{tpu_custom_call.1} parent=0
    #allocation3 [shape = 'u8[8192]{0}', space=vmem, size = 0x2000, scoped, tag = 'input window, operand 0']
    #allocation4 [shape = 's32[2]{0}', space=sflag, size = 0x8, scoped, tag = 'scoped memory for tpu_custom_call.1']
    #allocation5 [shape = 's32[2]{0}', space=sflag, size = 0x8, scoped, tag = 'scoped memory for tpu_custom_call.1']
    #allocation6 [shape = 'u8[8192]{0}', space=vmem, size = 0x2000, scoped, tag = 'input window, operand 1']
    #allocation7 [shape = 's32[2]{0}', space=sflag, size = 0x8, scoped, tag = 'scoped memory for tpu_custom_call.1']
    #allocation8 [shape = 'u8[8192]{0}', space=vmem, size = 0x2000, scoped, tag = 'input window, operand 2']
    #allocation9 [shape = 'u8[16384]{0}', space=vmem, size = 0x4000, scoped, tag = 'input window, operand 3, single buffered']
    #allocation10 [shape = 's32[1]{0}', space=sflag, size = 0x4, scoped, tag = 'scoped memory for tpu_custom_call.1']
    #allocation11 [shape = 'u8[16384]{0}', space=vmem, size = 0x4000, scoped, tag = 'input window, operand 4, single buffered']
    #allocation12 [shape = 'u8[16384]{0}', space=vmem, size = 0x4000, scoped, tag = 'input window, operand 5, single buffered']
    #allocation13 [shape = 's32[1]{0}', space=sflag, size = 0x4, scoped, tag = 'scoped memory for tpu_custom_call.1']
    #allocation14 [shape = 'u8[16384]{0}', space=vmem, size = 0x4000, scoped, tag = 'input window, operand 6, single buffered']
    #allocation15 [shape = 'u8[512]{0}', space=vmem, size = 0x400, scoped, tag = 'input window, operand 7, single buffered']
    #allocation16 [shape = 's32[1]{0}', space=sflag, size = 0x4, scoped, tag = 'scoped memory for tpu_custom_call.1']
    #allocation17 [shape = 'u8[512]{0}', space=vmem, size = 0x400, scoped, tag = 'input window, operand 8, single buffered']
    #allocation18 [shape = 'u8[512]{0}', space=vmem, size = 0x400, scoped, tag = 'input window, operand 9, single buffered']
    #allocation19 [shape = 's32[1]{0}', space=sflag, size = 0x4, scoped, tag = 'scoped memory for tpu_custom_call.1']
    #allocation20 [shape = 'u8[512]{0}', space=vmem, size = 0x400, scoped, tag = 'input window, operand 10, single buffered']
    #allocation21 [shape = 'u8[8192]{0}', space=vmem, size = 0x2000, scoped, tag = 'output window, operand 0']
    #allocation22 [shape = 'u8[32768]{0}', space=vmem, size = 0x8000, scoped, tag = 'output window, operand 1']
    #allocation23 [shape = 's32[2]{0}', space=sflag, size = 0x8, scoped, tag = 'scoped memory for tpu_custom_call.1']
    %18 = vsyncpa [#allocation4], 0
    %s19 = scalar_lea.sflag [#allocation4], 1
    %20 = vsyncpa %s19, 0
    %21 = vsyncpa [#allocation7], 0
    %s22 = scalar_lea.sflag [#allocation7], 1
    %23 = vsyncpa %s22, 0
    %24 = vsyncpa [#allocation10], 0
    %25 = vsyncpa [#allocation13], 0
    %26 = vsyncpa [#allocation16], 0
    %27 = vsyncpa [#allocation19], 0
    %28 = vsyncpa [#allocation5], 0
    %s29 = scalar_lea.sflag [#allocation5], 1
    %30 = vsyncpa %s29, 0
    %31 = vsyncpa [#allocation23], 0
    %s32 = scalar_lea.sflag [#allocation23], 1
    %33 = vsyncpa %s32, 0
    loop: start=0, step=1, limit=4
    $region2: #{tpu_custom_call.1} parent=1 // loop_pre_header
      _
    $region3: #{tpu_custom_call.1} parent=1 // loop_header
      %s35 = sphi 0, %s39
      %p36 = scmp.ge.s32.totalorder %s35, 4
      %s45 = sphi 0, %s47
      %s48 = sphi 0, %s45
      %s49 = sphi 0, %s48
      %s65 = sphi 0, %s49
      %s71 = sphi 0, %s73
      %s74 = sphi 0, %s71
      %s75 = sphi 0, %s74
      %s91 = sphi 0, %s75
      %s97 = sphi 0, %s99
      %s100 = sphi 0, %s97
      %s101 = sphi 0, %s100
      %s117 = sphi 0, %s101
      %s121 = sphi 0, %s121
      %s123 = sphi 0, %s121
      %s124 = sphi 0, %s123
      %s138 = sphi 0, %s124
      %s142 = sphi 0, %s142
      %s144 = sphi 0, %s142
      %s145 = sphi 0, %s144
      %s159 = sphi 0, %s145
      %s163 = sphi 0, %s163
      %s165 = sphi 0, %s163
      %s166 = sphi 0, %s165
      %s180 = sphi 0, %s166
      %s184 = sphi 0, %s184
      %s186 = sphi 0, %s184
      %s187 = sphi 0, %s186
      %s201 = sphi 0, %s187
      %s205 = sphi 0, %s205
      %s207 = sphi 0, %s205
      %s208 = sphi 0, %s207
      %s222 = sphi 0, %s208
      %s226 = sphi 0, %s226
      %s228 = sphi 0, %s226
      %s229 = sphi 0, %s228
      %s243 = sphi 0, %s229
      %s247 = sphi 0, %s247
      %s249 = sphi 0, %s247
      %s250 = sphi 0, %s249
      %s264 = sphi 0, %s250
      %s268 = sphi 0, %s268
      %s270 = sphi 0, %s268
      %s271 = sphi 0, %s270
      %s285 = sphi 0, %s271
      %s291 = sphi 0, %s293
      %s294 = sphi 0, %s291
      %s295 = sphi 0, %s294
      %s311 = sphi 0, %s295
      %s317 = sphi 0, %s319
      %s320 = sphi 0, %s317
      %s321 = sphi 0, %s320
      %s337 = sphi 0, %s321
    $region4: #{tpu_custom_call.1} parent=1 // loop_header_branch
      %38 = sbr.rel (%p36) target = $region8
    $region5: #{tpu_custom_call.1} parent=1 // loop_body
      %s40 = ssub.s32 %s35, 1
      %s41 = ssub.s32 %s35, 2
      %s42 = sadd.s32 %s35, 1
      %s43 = ssub.s32 %s35, %s42
      %p44 = scmp.eq.s32.totalorder %s43, 0
      %s46 = sadd.s32 %s45, 1
      %s47 = scalar_select %p44, %s45, %s46
      %p50 = pneg %p44
      %p51 = scmp.eq.s32.totalorder %s35, 1
      %p52 = por %p50, %p51
      %p53 = scmp.ne.s32.totalorder %s45, %s48
      %p54 = scmp.eq.s32.totalorder %s35, 0
      %p55 = por %p53, %p54
      %p56 = scmp.ne.s32.totalorder %s45, %s48
      %p57 = scmp.eq.s32.totalorder %s40, 1
      %p58 = por %p56, %p57
      %p59 = scmp.ne.s32.totalorder %s48, %s49
      %p60 = scmp.eq.s32.totalorder %s40, 0
      %p61 = por %p59, %p60
      %p62 = scmp.ne.s32.totalorder %s48, %s49
      %p63 = scmp.eq.s32.totalorder %s41, 1
      %p64 = por %p62, %p63
      %p66 = scmp.ne.s32.totalorder %s49, %s65
      %p67 = scmp.eq.s32.totalorder %s41, 0
      %p68 = por %p66, %p67
      %s69 = ssub.s32 %s35, %s42
      %p70 = scmp.eq.s32.totalorder %s69, 0
      %s72 = sadd.s32 %s71, 1
      %s73 = scalar_select %p70, %s71, %s72
      %p76 = pneg %p70
      %p77 = scmp.eq.s32.totalorder %s35, 1
      %p78 = por %p76, %p77
      %p79 = scmp.ne.s32.totalorder %s71, %s74
      %p80 = scmp.eq.s32.totalorder %s35, 0
      %p81 = por %p79, %p80
      %p82 = scmp.ne.s32.totalorder %s71, %s74
      %p83 = scmp.eq.s32.totalorder %s40, 1
      %p84 = por %p82, %p83
      %p85 = scmp.ne.s32.totalorder %s74, %s75
      %p86 = scmp.eq.s32.totalorder %s40, 0
      %p87 = por %p85, %p86
      %p88 = scmp.ne.s32.totalorder %s74, %s75
      %p89 = scmp.eq.s32.totalorder %s41, 1
      %p90 = por %p88, %p89
      %p92 = scmp.ne.s32.totalorder %s75, %s91
      %p93 = scmp.eq.s32.totalorder %s41, 0
      %p94 = por %p92, %p93
      %s95 = ssub.s32 %s35, %s42
      %p96 = scmp.eq.s32.totalorder %s95, 0
      %s98 = sadd.s32 %s97, 1
      %s99 = scalar_select %p96, %s97, %s98
      %p102 = pneg %p96
      %p103 = scmp.eq.s32.totalorder %s35, 1
      %p104 = por %p102, %p103
      %p105 = scmp.ne.s32.totalorder %s97, %s100
      %p106 = scmp.eq.s32.totalorder %s35, 0
      %p107 = por %p105, %p106
      %p108 = scmp.ne.s32.totalorder %s97, %s100
      %p109 = scmp.eq.s32.totalorder %s40, 1
      %p110 = por %p108, %p109
      %p111 = scmp.ne.s32.totalorder %s100, %s101
      %p112 = scmp.eq.s32.totalorder %s40, 0
      %p113 = por %p111, %p112
      %p114 = scmp.ne.s32.totalorder %s100, %s101
      %p115 = scmp.eq.s32.totalorder %s41, 1
      %p116 = por %p114, %p115
      %p118 = scmp.ne.s32.totalorder %s101, %s117
      %p119 = scmp.eq.s32.totalorder %s41, 0
      %p120 = por %p118, %p119
      %s122 = sadd.s32 %s121, 1
      %p125 = scmp.eq.s32.totalorder %s35, 1
      %p126 = scmp.ne.s32.totalorder %s121, %s123
      %p127 = scmp.eq.s32.totalorder %s35, 0
      %p128 = por %p126, %p127
      %p129 = scmp.ne.s32.totalorder %s121, %s123
      %p130 = scmp.eq.s32.totalorder %s40, 1
      %p131 = por %p129, %p130
      %p132 = scmp.ne.s32.totalorder %s123, %s124
      %p133 = scmp.eq.s32.totalorder %s40, 0
      %p134 = por %p132, %p133
      %p135 = scmp.ne.s32.totalorder %s123, %s124
      %p136 = scmp.eq.s32.totalorder %s41, 1
      %p137 = por %p135, %p136
      %p139 = scmp.ne.s32.totalorder %s124, %s138
      %p140 = scmp.eq.s32.totalorder %s41, 0
      %p141 = por %p139, %p140
      %s143 = sadd.s32 %s142, 1
      %p146 = scmp.eq.s32.totalorder %s35, 1
      %p147 = scmp.ne.s32.totalorder %s142, %s144
      %p148 = scmp.eq.s32.totalorder %s35, 0
      %p149 = por %p147, %p148
      %p150 = scmp.ne.s32.totalorder %s142, %s144
      %p151 = scmp.eq.s32.totalorder %s40, 1
      %p152 = por %p150, %p151
      %p153 = scmp.ne.s32.totalorder %s144, %s145
      %p154 = scmp.eq.s32.totalorder %s40, 0
      %p155 = por %p153, %p154
      %p156 = scmp.ne.s32.totalorder %s144, %s145
      %p157 = scmp.eq.s32.totalorder %s41, 1
      %p158 = por %p156, %p157
      %p160 = scmp.ne.s32.totalorder %s145, %s159
      %p161 = scmp.eq.s32.totalorder %s41, 0
      %p162 = por %p160, %p161
      %s164 = sadd.s32 %s163, 1
      %p167 = scmp.eq.s32.totalorder %s35, 1
      %p168 = scmp.ne.s32.totalorder %s163, %s165
      %p169 = scmp.eq.s32.totalorder %s35, 0
      %p170 = por %p168, %p169
      %p171 = scmp.ne.s32.totalorder %s163, %s165
      %p172 = scmp.eq.s32.totalorder %s40, 1
      %p173 = por %p171, %p172
      %p174 = scmp.ne.s32.totalorder %s165, %s166
      %p175 = scmp.eq.s32.totalorder %s40, 0
      %p176 = por %p174, %p175
      %p177 = scmp.ne.s32.totalorder %s165, %s166
      %p178 = scmp.eq.s32.totalorder %s41, 1
      %p179 = por %p177, %p178
      %p181 = scmp.ne.s32.totalorder %s166, %s180
      %p182 = scmp.eq.s32.totalorder %s41, 0
      %p183 = por %p181, %p182
      %s185 = sadd.s32 %s184, 1
      %p188 = scmp.eq.s32.totalorder %s35, 1
      %p189 = scmp.ne.s32.totalorder %s184, %s186
      %p190 = scmp.eq.s32.totalorder %s35, 0
      %p191 = por %p189, %p190
      %p192 = scmp.ne.s32.totalorder %s184, %s186
      %p193 = scmp.eq.s32.totalorder %s40, 1
      %p194 = por %p192, %p193
      %p195 = scmp.ne.s32.totalorder %s186, %s187
      %p196 = scmp.eq.s32.totalorder %s40, 0
      %p197 = por %p195, %p196
      %p198 = scmp.ne.s32.totalorder %s186, %s187
      %p199 = scmp.eq.s32.totalorder %s41, 1
      %p200 = por %p198, %p199
      %p202 = scmp.ne.s32.totalorder %s187, %s201
      %p203 = scmp.eq.s32.totalorder %s41, 0
      %p204 = por %p202, %p203
      %s206 = sadd.s32 %s205, 1
      %p209 = scmp.eq.s32.totalorder %s35, 1
      %p210 = scmp.ne.s32.totalorder %s205, %s207
      %p211 = scmp.eq.s32.totalorder %s35, 0
      %p212 = por %p210, %p211
      %p213 = scmp.ne.s32.totalorder %s205, %s207
      %p214 = scmp.eq.s32.totalorder %s40, 1
      %p215 = por %p213, %p214
      %p216 = scmp.ne.s32.totalorder %s207, %s208
      %p217 = scmp.eq.s32.totalorder %s40, 0
      %p218 = por %p216, %p217
      %p219 = scmp.ne.s32.totalorder %s207, %s208
      %p220 = scmp.eq.s32.totalorder %s41, 1
      %p221 = por %p219, %p220
      %p223 = scmp.ne.s32.totalorder %s208, %s222
      %p224 = scmp.eq.s32.totalorder %s41, 0
      %p225 = por %p223, %p224
      %s227 = sadd.s32 %s226, 1
      %p230 = scmp.eq.s32.totalorder %s35, 1
      %p231 = scmp.ne.s32.totalorder %s226, %s228
      %p232 = scmp.eq.s32.totalorder %s35, 0
      %p233 = por %p231, %p232
      %p234 = scmp.ne.s32.totalorder %s226, %s228
      %p235 = scmp.eq.s32.totalorder %s40, 1
      %p236 = por %p234, %p235
      %p237 = scmp.ne.s32.totalorder %s228, %s229
      %p238 = scmp.eq.s32.totalorder %s40, 0
      %p239 = por %p237, %p238
      %p240 = scmp.ne.s32.totalorder %s228, %s229
      %p241 = scmp.eq.s32.totalorder %s41, 1
      %p242 = por %p240, %p241
      %p244 = scmp.ne.s32.totalorder %s229, %s243
      %p245 = scmp.eq.s32.totalorder %s41, 0
      %p246 = por %p244, %p245
      %s248 = sadd.s32 %s247, 1
      %p251 = scmp.eq.s32.totalorder %s35, 1
      %p252 = scmp.ne.s32.totalorder %s247, %s249
      %p253 = scmp.eq.s32.totalorder %s35, 0
      %p254 = por %p252, %p253
      %p255 = scmp.ne.s32.totalorder %s247, %s249
      %p256 = scmp.eq.s32.totalorder %s40, 1
      %p257 = por %p255, %p256
      %p258 = scmp.ne.s32.totalorder %s249, %s250
      %p259 = scmp.eq.s32.totalorder %s40, 0
      %p260 = por %p258, %p259
      %p261 = scmp.ne.s32.totalorder %s249, %s250
      %p262 = scmp.eq.s32.totalorder %s41, 1
      %p263 = por %p261, %p262
      %p265 = scmp.ne.s32.totalorder %s250, %s264
      %p266 = scmp.eq.s32.totalorder %s41, 0
      %p267 = por %p265, %p266
      %s269 = sadd.s32 %s268, 1
      %p272 = scmp.eq.s32.totalorder %s35, 1
      %p273 = scmp.ne.s32.totalorder %s268, %s270
      %p274 = scmp.eq.s32.totalorder %s35, 0
      %p275 = por %p273, %p274
      %p276 = scmp.ne.s32.totalorder %s268, %s270
      %p277 = scmp.eq.s32.totalorder %s40, 1
      %p278 = por %p276, %p277
      %p279 = scmp.ne.s32.totalorder %s270, %s271
      %p280 = scmp.eq.s32.totalorder %s40, 0
      %p281 = por %p279, %p280
      %p282 = scmp.ne.s32.totalorder %s270, %s271
      %p283 = scmp.eq.s32.totalorder %s41, 1
      %p284 = por %p282, %p283
      %p286 = scmp.ne.s32.totalorder %s271, %s285
      %p287 = scmp.eq.s32.totalorder %s41, 0
      %p288 = por %p286, %p287
      %s289 = ssub.s32 %s35, %s42
      %p290 = scmp.eq.s32.totalorder %s289, 0
      %s292 = sadd.s32 %s291, 1
      %s293 = scalar_select %p290, %s291, %s292
      %p296 = pneg %p290
      %p297 = scmp.eq.s32.totalorder %s35, 1
      %p298 = por %p296, %p297
      %p299 = scmp.ne.s32.totalorder %s291, %s294
      %p300 = scmp.eq.s32.totalorder %s35, 0
      %p301 = por %p299, %p300
      %p302 = scmp.ne.s32.totalorder %s291, %s294
      %p303 = scmp.eq.s32.totalorder %s40, 1
      %p304 = por %p302, %p303
      %p305 = scmp.ne.s32.totalorder %s294, %s295
      %p306 = scmp.eq.s32.totalorder %s40, 0
      %p307 = por %p305, %p306
      %p308 = scmp.ne.s32.totalorder %s294, %s295
      %p309 = scmp.eq.s32.totalorder %s41, 1
      %p310 = por %p308, %p309
      %p312 = scmp.ne.s32.totalorder %s295, %s311
      %p313 = scmp.eq.s32.totalorder %s41, 0
      %p314 = por %p312, %p313
      %s315 = ssub.s32 %s35, %s42
      %p316 = scmp.eq.s32.totalorder %s315, 0
      %s318 = sadd.s32 %s317, 1
      %s319 = scalar_select %p316, %s317, %s318
      %p322 = pneg %p316
      %p323 = scmp.eq.s32.totalorder %s35, 1
      %p324 = por %p322, %p323
      %p325 = scmp.ne.s32.totalorder %s317, %s320
      %p326 = scmp.eq.s32.totalorder %s35, 0
      %p327 = por %p325, %p326
      %p328 = scmp.ne.s32.totalorder %s317, %s320
      %p329 = scmp.eq.s32.totalorder %s40, 1
      %p330 = por %p328, %p329
      %p331 = scmp.ne.s32.totalorder %s320, %s321
      %p332 = scmp.eq.s32.totalorder %s40, 0
      %p333 = por %p331, %p332
      %p334 = scmp.ne.s32.totalorder %s320, %s321
      %p335 = scmp.eq.s32.totalorder %s41, 1
      %p336 = por %p334, %p335
      %p338 = scmp.ne.s32.totalorder %s321, %s337
      %p339 = scmp.eq.s32.totalorder %s41, 0
      %p340 = por %p338, %p339
      %p341 = scmp.le.s32.totalorder 1, %s35
      %p342 = scmp.lt.s32.totalorder %s35, 3
      %p343 = pnand %p341, %p342
      %p344 = pneg %p343
      // Predicated region
      $region9: #{tpu_custom_call.1} parent=5 // pred_check
        _
      $region10: #{tpu_custom_call.1} parent=5 // pred_check_branch
        %346 = sbr.rel (%p343) target = $region12
      $region11: #{tpu_custom_call.1} parent=5 // pred_region
        %s347 = ssub.s32 %s35, 1
        // Predicated region
        $region13: #{tpu_custom_call.1} parent=11 // pred_check
          %p348 = pneg %p134
        $region14: #{tpu_custom_call.1} parent=11 // pred_check_branch
          %350 = sbr.rel (%p348) target = $region16
        $region15: #{tpu_custom_call.1} parent=11 // pred_region
          %s352 = ssub.s32 512, 512
          %353 = vsyncadd [#allocation10], %s352
          %s354 = sshll.u32 [#allocation9], 4
          %s355 = int_to_ptr.vmem [resolvable:$true] %s354
          %360 = dma.hbm_to_vmem [thread:$0]  %s3, 512, %s355, [#allocation10], 128, 128, 8
        $region16: #{tpu_custom_call.1} parent=11 // pred_fallthru
          _
        // Predicated region
        $region17: #{tpu_custom_call.1} parent=11 // pred_check
          %p361 = pneg %p155
        $region18: #{tpu_custom_call.1} parent=11 // pred_check_branch
          %363 = sbr.rel (%p361) target = $region20
        $region19: #{tpu_custom_call.1} parent=11 // pred_region
          %s365 = ssub.s32 512, 512
          %366 = vsyncadd [#allocation10], %s365
          %s367 = sshll.u32 [#allocation11], 4
          %s368 = int_to_ptr.vmem [resolvable:$true] %s367
          %373 = dma.hbm_to_vmem [thread:$0]  %s4, 512, %s368, [#allocation10], 128, 128, 8
        $region20: #{tpu_custom_call.1} parent=11 // pred_fallthru
          _
        // Predicated region
        $region21: #{tpu_custom_call.1} parent=11 // pred_check
          %p374 = pneg %p176
        $region22: #{tpu_custom_call.1} parent=11 // pred_check_branch
          %376 = sbr.rel (%p374) target = $region24
        $region23: #{tpu_custom_call.1} parent=11 // pred_region
          %s378 = ssub.s32 512, 512
          %379 = vsyncadd [#allocation13], %s378
          %s380 = sshll.u32 [#allocation12], 4
          %s381 = int_to_ptr.vmem [resolvable:$true] %s380
          %386 = dma.hbm_to_vmem [thread:$0]  %s5, 512, %s381, [#allocation13], 128, 128, 8
        $region24: #{tpu_custom_call.1} parent=11 // pred_fallthru
          _
        // Predicated region
        $region25: #{tpu_custom_call.1} parent=11 // pred_check
          %p387 = pneg %p197
        $region26: #{tpu_custom_call.1} parent=11 // pred_check_branch
          %389 = sbr.rel (%p387) target = $region28
        $region27: #{tpu_custom_call.1} parent=11 // pred_region
          %s391 = ssub.s32 512, 512
          %392 = vsyncadd [#allocation13], %s391
          %s393 = sshll.u32 [#allocation14], 4
          %s394 = int_to_ptr.vmem [resolvable:$true] %s393
          %399 = dma.hbm_to_vmem [thread:$0]  %s6, 512, %s394, [#allocation13], 128, 128, 8
        $region28: #{tpu_custom_call.1} parent=11 // pred_fallthru
          _
        // Predicated region
        $region29: #{tpu_custom_call.1} parent=11 // pred_check
          %p400 = pneg %p218
        $region30: #{tpu_custom_call.1} parent=11 // pred_check_branch
          %402 = sbr.rel (%p400) target = $region32
        $region31: #{tpu_custom_call.1} parent=11 // pred_region
          %s404 = ssub.s32 16, 16
          %405 = vsyncadd [#allocation16], %s404
          %s407 = sshll.u32 [#allocation15], 4
          %s408 = int_to_ptr.vmem [resolvable:$true] %s407
          %410 = dma.hbm_to_vmem [thread:$0]  %s7, 16, %s408, [#allocation16]
        $region32: #{tpu_custom_call.1} parent=11 // pred_fallthru
          _
        // Predicated region
        $region33: #{tpu_custom_call.1} parent=11 // pred_check
          %p411 = pneg %p239
        $region34: #{tpu_custom_call.1} parent=11 // pred_check_branch
          %413 = sbr.rel (%p411) target = $region36
        $region35: #{tpu_custom_call.1} parent=11 // pred_region
          %s415 = ssub.s32 16, 16
          %416 = vsyncadd [#allocation16], %s415
          %s418 = sshll.u32 [#allocation17], 4
          %s419 = int_to_ptr.vmem [resolvable:$true] %s418
          %421 = dma.hbm_to_vmem [thread:$0]  %s8, 16, %s419, [#allocation16]
        $region36: #{tpu_custom_call.1} parent=11 // pred_fallthru
          _
        // Predicated region
        $region37: #{tpu_custom_call.1} parent=11 // pred_check
          %p422 = pneg %p260
        $region38: #{tpu_custom_call.1} parent=11 // pred_check_branch
          %424 = sbr.rel (%p422) target = $region40
        $region39: #{tpu_custom_call.1} parent=11 // pred_region
          %s426 = ssub.s32 16, 16
          %427 = vsyncadd [#allocation19], %s426
          %s429 = sshll.u32 [#allocation18], 4
          %s430 = int_to_ptr.vmem [resolvable:$true] %s429
          %432 = dma.hbm_to_vmem [thread:$0]  %s9, 16, %s430, [#allocation19]
        $region40: #{tpu_custom_call.1} parent=11 // pred_fallthru
          _
        // Predicated region
        $region41: #{tpu_custom_call.1} parent=11 // pred_check
          %p433 = pneg %p281
        $region42: #{tpu_custom_call.1} parent=11 // pred_check_branch
          %435 = sbr.rel (%p433) target = $region44
        $region43: #{tpu_custom_call.1} parent=11 // pred_region
          %s437 = ssub.s32 16, 16
          %438 = vsyncadd [#allocation19], %s437
          %s440 = sshll.u32 [#allocation20], 4
          %s441 = int_to_ptr.vmem [resolvable:$true] %s440
          %443 = dma.hbm_to_vmem [thread:$0]  %s10, 16, %s441, [#allocation19]
        $region44: #{tpu_custom_call.1} parent=11 // pred_fallthru
          _
      $region12: #{tpu_custom_call.1} parent=5 // pred_fallthru
        _
      %p444 = scmp.lt.s32.totalorder %s35, 2
      // Predicated region
      $region45: #{tpu_custom_call.1} parent=5 // pred_check
        %p445 = pneg %p444
      $region46: #{tpu_custom_call.1} parent=5 // pred_check_branch
        %447 = sbr.rel (%p445) target = $region48
      $region47: #{tpu_custom_call.1} parent=5 // pred_region
        // Predicated region
        $region49: #{tpu_custom_call.1} parent=47 // pred_check
          %p448 = pneg %p55
        $region50: #{tpu_custom_call.1} parent=47 // pred_check_branch
          %450 = sbr.rel (%p448) target = $region52
        $region51: #{tpu_custom_call.1} parent=47 // pred_region
          %s451 = sand.u32 %s45, 1
          %s452 = scalar_lea.sflag [#allocation4], %s451
          %s453 = sand.u32 %s45, 1
          %s454 = smul.addr %s453, 8
          %s455 = scalar_lea.vmem [#allocation3], %s454
          %s457 = ssub.s32 128, 128
          %458 = vsyncadd %s452, %s457
          %s459 = smul.addr %s35, 128
          %s460 = scalar_lea.hbm %s0, %s459
          %s462 = sshll.u32 %s455, 4
          %s463 = int_to_ptr.vmem [resolvable:$true] %s462
          %465 = dma.hbm_to_vmem [thread:$0]  %s460, 128, %s463, %s452
        $region52: #{tpu_custom_call.1} parent=47 // pred_fallthru
          _
        // Predicated region
        $region53: #{tpu_custom_call.1} parent=47 // pred_check
          %p466 = pneg %p81
        $region54: #{tpu_custom_call.1} parent=47 // pred_check_branch
          %468 = sbr.rel (%p466) target = $region56
        $region55: #{tpu_custom_call.1} parent=47 // pred_region
          %s469 = sand.u32 %s35, 1
          %s470 = scalar_lea.sflag [#allocation7], %s469
          %s471 = sand.u32 %s71, 1
          %s472 = smul.addr %s471, 8
          %s473 = scalar_lea.vmem [#allocation6], %s472
          %s475 = ssub.s32 128, 128
          %476 = vsyncadd %s470, %s475
          %s477 = smul.addr %s35, 128
          %s478 = scalar_lea.hbm %s1, %s477
          %s480 = sshll.u32 %s473, 4
          %s481 = int_to_ptr.vmem [resolvable:$true] %s480
          %483 = dma.hbm_to_vmem [thread:$0]  %s478, 128, %s481, %s470
        $region56: #{tpu_custom_call.1} parent=47 // pred_fallthru
          _
        // Predicated region
        $region57: #{tpu_custom_call.1} parent=47 // pred_check
          %p484 = pneg %p107
        $region58: #{tpu_custom_call.1} parent=47 // pred_check_branch
          %486 = sbr.rel (%p484) target = $region60
        $region59: #{tpu_custom_call.1} parent=47 // pred_region
          %s487 = sand.u32 %s35, 1
          %s488 = scalar_lea.sflag [#allocation7], %s487
          %s489 = sand.u32 %s97, 1
          %s490 = smul.addr %s489, 8
          %s491 = scalar_lea.vmem [#allocation8], %s490
          %s493 = ssub.s32 128, 128
          %494 = vsyncadd %s488, %s493
          %s495 = smul.addr %s35, 128
          %s496 = scalar_lea.hbm %s2, %s495
          %s498 = sshll.u32 %s491, 4
          %s499 = int_to_ptr.vmem [resolvable:$true] %s498
          %501 = dma.hbm_to_vmem [thread:$0]  %s496, 128, %s499, %s488
        $region60: #{tpu_custom_call.1} parent=47 // pred_fallthru
          _
      $region48: #{tpu_custom_call.1} parent=5 // pred_fallthru
        _
      %p502 = scmp.le.s32.totalorder 1, %s35
      %p503 = scmp.lt.s32.totalorder %s35, 3
      %p504 = pnand %p502, %p503
      %p505 = pneg %p504
      // Predicated region
      $region61: #{tpu_custom_call.1} parent=5 // pred_check
        _
      $region62: #{tpu_custom_call.1} parent=5 // pred_check_branch
        %507 = sbr.rel (%p504) target = $region64
      $region63: #{tpu_custom_call.1} parent=5 // pred_region
        %s508 = ssub.s32 %s35, 1
        %s509 = sand.u32 %s48, 1
        %s510 = scalar_lea.sflag [#allocation4], %s509
        %s511 = sand.u32 %s48, 1
        %s512 = smul.addr %s511, 8
        %s513 = scalar_lea.vmem [#allocation3], %s512
        // Predicated region
        $region65: #{tpu_custom_call.1} parent=63 // pred_check
          %p514 = pneg %p61
        $region66: #{tpu_custom_call.1} parent=63 // pred_check_branch
          %516 = sbr.rel (%p514) target = $region68
        $region67: #{tpu_custom_call.1} parent=63 // pred_region
          %517 = dma.done %s510, 128
        $region68: #{tpu_custom_call.1} parent=63 // pred_fallthru
          _
        %s518 = sand.u32 %s40, 1
        %s519 = scalar_lea.sflag [#allocation7], %s518
        %s520 = sand.u32 %s74, 1
        %s521 = smul.addr %s520, 8
        %s522 = scalar_lea.vmem [#allocation6], %s521
        // Predicated region
        $region69: #{tpu_custom_call.1} parent=63 // pred_check
          %p523 = pneg %p87
        $region70: #{tpu_custom_call.1} parent=63 // pred_check_branch
          %525 = sbr.rel (%p523) target = $region72
        $region71: #{tpu_custom_call.1} parent=63 // pred_region
          %526 = dma.done %s519, 128
        $region72: #{tpu_custom_call.1} parent=63 // pred_fallthru
          _
        %s527 = sand.u32 %s40, 1
        %s528 = scalar_lea.sflag [#allocation7], %s527
        %s529 = sand.u32 %s100, 1
        %s530 = smul.addr %s529, 8
        %s531 = scalar_lea.vmem [#allocation8], %s530
        // Predicated region
        $region73: #{tpu_custom_call.1} parent=63 // pred_check
          %p532 = pneg %p113
        $region74: #{tpu_custom_call.1} parent=63 // pred_check_branch
          %534 = sbr.rel (%p532) target = $region76
        $region75: #{tpu_custom_call.1} parent=63 // pred_region
          %535 = dma.done %s528, 128
        $region76: #{tpu_custom_call.1} parent=63 // pred_fallthru
          _
        // Predicated region
        $region77: #{tpu_custom_call.1} parent=63 // pred_check
          %p536 = pneg %p134
        $region78: #{tpu_custom_call.1} parent=63 // pred_check_branch
          %538 = sbr.rel (%p536) target = $region80
        $region79: #{tpu_custom_call.1} parent=63 // pred_region
          %539 = dma.done [#allocation10], 512
        $region80: #{tpu_custom_call.1} parent=63 // pred_fallthru
          _
        // Predicated region
        $region81: #{tpu_custom_call.1} parent=63 // pred_check
          %p540 = pneg %p155
        $region82: #{tpu_custom_call.1} parent=63 // pred_check_branch
          %542 = sbr.rel (%p540) target = $region84
        $region83: #{tpu_custom_call.1} parent=63 // pred_region
          %543 = dma.done [#allocation10], 512
        $region84: #{tpu_custom_call.1} parent=63 // pred_fallthru
          _
        // Predicated region
        $region85: #{tpu_custom_call.1} parent=63 // pred_check
          %p544 = pneg %p176
        $region86: #{tpu_custom_call.1} parent=63 // pred_check_branch
          %546 = sbr.rel (%p544) target = $region88
        $region87: #{tpu_custom_call.1} parent=63 // pred_region
          %547 = dma.done [#allocation13], 512
        $region88: #{tpu_custom_call.1} parent=63 // pred_fallthru
          _
        // Predicated region
        $region89: #{tpu_custom_call.1} parent=63 // pred_check
          %p548 = pneg %p197
        $region90: #{tpu_custom_call.1} parent=63 // pred_check_branch
          %550 = sbr.rel (%p548) target = $region92
        $region91: #{tpu_custom_call.1} parent=63 // pred_region
          %551 = dma.done [#allocation13], 512
        $region92: #{tpu_custom_call.1} parent=63 // pred_fallthru
          _
        // Predicated region
        $region93: #{tpu_custom_call.1} parent=63 // pred_check
          %p552 = pneg %p218
        $region94: #{tpu_custom_call.1} parent=63 // pred_check_branch
          %554 = sbr.rel (%p552) target = $region96
        $region95: #{tpu_custom_call.1} parent=63 // pred_region
          %555 = dma.done [#allocation16], 16
        $region96: #{tpu_custom_call.1} parent=63 // pred_fallthru
          _
        // Predicated region
        $region97: #{tpu_custom_call.1} parent=63 // pred_check
          %p556 = pneg %p239
        $region98: #{tpu_custom_call.1} parent=63 // pred_check_branch
          %558 = sbr.rel (%p556) target = $region100
        $region99: #{tpu_custom_call.1} parent=63 // pred_region
          %559 = dma.done [#allocation16], 16
        $region100: #{tpu_custom_call.1} parent=63 // pred_fallthru
          _
        // Predicated region
        $region101: #{tpu_custom_call.1} parent=63 // pred_check
          %p560 = pneg %p260
        $region102: #{tpu_custom_call.1} parent=63 // pred_check_branch
          %562 = sbr.rel (%p560) target = $region104
        $region103: #{tpu_custom_call.1} parent=63 // pred_region
          %563 = dma.done [#allocation19], 16
        $region104: #{tpu_custom_call.1} parent=63 // pred_fallthru
          _
        // Predicated region
        $region105: #{tpu_custom_call.1} parent=63 // pred_check
          %p564 = pneg %p281
        $region106: #{tpu_custom_call.1} parent=63 // pred_check_branch
          %566 = sbr.rel (%p564) target = $region108
        $region107: #{tpu_custom_call.1} parent=63 // pred_region
          %567 = dma.done [#allocation19], 16
        $region108: #{tpu_custom_call.1} parent=63 // pred_fallthru
          _
        %s568 = sand.u32 %s48, 1
        %s569 = scalar_lea.sflag [#allocation4], %s568
        %s570 = sand.u32 %s48, 1
        %s571 = smul.addr %s570, 8
        %s572 = scalar_lea.vmem [#allocation3], %s571
        %p573 = pneg %p61
        %p574 = pneg %p58
        %s575 = sand.u32 %s40, 1
        %s576 = scalar_lea.sflag [#allocation7], %s575
        %s577 = sand.u32 %s74, 1
        %s578 = smul.addr %s577, 8
        %s579 = scalar_lea.vmem [#allocation6], %s578
        %p580 = pneg %p87
        %p581 = pneg %p84
        %s582 = sand.u32 %s40, 1
        %s583 = scalar_lea.sflag [#allocation7], %s582
        %s584 = sand.u32 %s100, 1
        %s585 = smul.addr %s584, 8
        %s586 = scalar_lea.vmem [#allocation8], %s585
        %p587 = pneg %p113
        %p588 = pneg %p110
        %p589 = pneg %p134
        %p590 = pneg %p131
        %p591 = pneg %p155
        %p592 = pneg %p152
        %p593 = pneg %p176
        %p594 = pneg %p173
        %p595 = pneg %p197
        %p596 = pneg %p194
        %p597 = pneg %p218
        %p598 = pneg %p215
        %p599 = pneg %p239
        %p600 = pneg %p236
        %p601 = pneg %p260
        %p602 = pneg %p257
        %p603 = pneg %p281
        %p604 = pneg %p278
        %p605 = pneg %p307
        %p606 = pneg %p304
        %s607 = sand.u32 %s294, 1
        %s608 = scalar_lea.sflag [#allocation5], %s607
        %s609 = sand.u32 %s294, 1
        %s610 = smul.addr %s609, 8
        %s611 = scalar_lea.vmem [#allocation21], %s610
        %p612 = pneg %p333
        %p613 = pneg %p330
        %s614 = sand.u32 %s320, 1
        %s615 = scalar_lea.sflag [#allocation23], %s614
        %s616 = sand.u32 %s320, 1
        %s617 = smul.addr %s616, 32
        %s618 = scalar_lea.vmem [#allocation22], %s617
        %v619 = vld [vmem:[%s513] sm:$0xff]
        %v620 = vld [vmem:[%s522] sm:$0xff]
        %v621 = vld [vmem:[%s531] sm:$0xff]
        %v622 = vld [vmem:[#allocation9] sm:$0xff]
        %v623 = vld [vmem:[#allocation9 + $0x8] sm:$0xff]
        %v624 = vld [vmem:[#allocation9 + $0x10] sm:$0xff]
        %v625 = vld [vmem:[#allocation9 + $0x18] sm:$0xff]
        %v626 = vld [vmem:[#allocation15] sm:$0x1]
        %v628 = vlaneseq
        %v629 = vshrl.u32 %v628, 7
        %v630 = vsub.s32 0, %v629
        %v631 = vrot.slane %v626, %v630
        %vm633 = vcmask 261120
        %v635 = vsel %vm633, %v619, 0
        %v638 = vsel %vm633, %v622, 0
        %v641 = vsel %vm633, %v623, 0
        %v644 = vsel %vm633, %v624, 0
        %v647 = vsel %vm633, %v625, 0
        %649 = vmatprep.subr.mxu0 0.0
        %650 = vmatpush1.xpose.msra.mxu0 %v638
        %651 = vmatprep.subr.mxu0 0.0
        %652 = vmatpush1.xpose.msra.mxu0 %v641
        %653 = vmatprep.subr.mxu0 0.0
        %654 = vmatpush1.xpose.msra.mxu0 %v644
        %655 = vmatprep.subr.mxu0 0.0
        %656 = vmatpush1.xpose.msra.mxu0 %v647
        %657 = vmatprep.subr.mxu0 0.0
        %658 = vmatpush1.xpose.msra.mxu0 0.0
        %659 = vmatprep.subr.mxu0 0.0
        %660 = vmatpush1.xpose.msra.mxu0 0.0
        %661 = vmatprep.subr.mxu0 0.0
        %662 = vmatpush1.xpose.msra.mxu0 0.0
        %663 = vmatprep.subr.mxu0 0.0
        %664 = vmatpush1.xpose.msra.mxu0 0.0
        %665 = vmatprep.subr.mxu0 0.0
        %666 = vmatpush1.xpose.msra.mxu0 0.0
        %667 = vmatprep.subr.mxu0 0.0
        %668 = vmatpush1.xpose.msra.mxu0 0.0
        %669 = vmatprep.subr.mxu0 0.0
        %670 = vmatpush1.xpose.msra.mxu0 0.0
        %671 = vmatprep.subr.mxu0 0.0
        %672 = vmatpush1.xpose.msra.mxu0 0.0
        %673 = vmatprep.subr.mxu0 0.0
        %674 = vmatpush1.xpose.msra.mxu0 0.0
        %675 = vmatprep.subr.mxu0 0.0
        %676 = vmatpush1.xpose.msra.mxu0 0.0
        %677 = vmatprep.subr.mxu0 0.0
        %678 = vmatpush1.xpose.msra.mxu0 0.0
        %679 = vmatprep.subr.mxu0 0.0
        %680 = vmatpush1.xpose.msra.mxu0 0.0
        %681 = vmatprep.subr.mxu0 0.0
        %682 = vmatpush1.xpose.msra.mxu0 0.0
        %683 = vmatprep.subr.mxu0 0.0
        %684 = vmatpush1.xpose.msra.mxu0 0.0
        %685 = vmatprep.subr.mxu0 0.0
        %686 = vmatpush1.xpose.msra.mxu0 0.0
        %687 = vmatprep.subr.mxu0 0.0
        %688 = vmatpush1.xpose.msra.mxu0 0.0
        %689 = vmatprep.subr.mxu0 0.0
        %690 = vmatpush1.xpose.msra.mxu0 0.0
        %691 = vmatprep.subr.mxu0 0.0
        %692 = vmatpush1.xpose.msra.mxu0 0.0
        %693 = vmatprep.subr.mxu0 0.0
        %694 = vmatpush1.xpose.msra.mxu0 0.0
        %695 = vmatprep.subr.mxu0 0.0
        %696 = vmatpush1.xpose.msra.mxu0 0.0
        %697 = vmatprep.subr.mxu0 0.0
        %698 = vmatpush1.xpose.msra.mxu0 0.0
        %699 = vmatprep.subr.mxu0 0.0
        %700 = vmatpush1.xpose.msra.mxu0 0.0
        %701 = vmatprep.subr.mxu0 0.0
        %702 = vmatpush1.xpose.msra.mxu0 0.0
        %703 = vmatprep.subr.mxu0 0.0
        %704 = vmatpush1.xpose.msra.mxu0 0.0
        %705 = vmatprep.subr.mxu0 0.0
        %706 = vmatpush1.xpose.msra.mxu0 0.0
        %707 = vmatprep.subr.mxu0 0.0
        %708 = vmatpush1.xpose.msra.mxu0 0.0
        %709 = vmatprep.subr.mxu0 0.0
        %710 = vmatpush1.xpose.msra.mxu0 0.0
        %711 = vmatprep.subr.mxu0 0.0
        %712 = vmatpush1.xpose.msra.mxu0 0.0
        %713 = vmatprep.mubr.f32.mxu0 0.0
        %714 = vmatmul.mubr.f32.gmra.mrb[0].mxu0 %v635
        %v715 = vpop.f32.mrb[0].mxu0
        %v716 = vadd.f32 %v631, %v715
        %v717 = vpop.f32.mrb[0].mxu0
        %718 = vdwg.mxu0
        %v719 = vmul.f32 %v716, 0.35355338
        %v720 = vld [vmem:[#allocation11] sm:$0xff]
        %v721 = vld [vmem:[#allocation11 + $0x8] sm:$0xff]
        %v722 = vld [vmem:[#allocation11 + $0x10] sm:$0xff]
        %v723 = vld [vmem:[#allocation11 + $0x18] sm:$0xff]
        %v724 = vld [vmem:[#allocation17] sm:$0x1]
        %v726 = vlaneseq
        %v727 = vshrl.u32 %v726, 7
        %v728 = vsub.s32 0, %v727
        %v729 = vrot.slane %v724, %v728
        %v732 = vsel %vm633, %v620, 0
        %v735 = vsel %vm633, %v720, 0
        %v738 = vsel %vm633, %v721, 0
        %v741 = vsel %vm633, %v722, 0
        %v744 = vsel %vm633, %v723, 0
        %746 = vmatprep.subr.mxu0 0.0
        %747 = vmatpush1.xpose.msra.mxu0 %v735
        %748 = vmatprep.subr.mxu0 0.0
        %749 = vmatpush1.xpose.msra.mxu0 %v738
        %750 = vmatprep.subr.mxu0 0.0
        %751 = vmatpush1.xpose.msra.mxu0 %v741
        %752 = vmatprep.subr.mxu0 0.0
        %753 = vmatpush1.xpose.msra.mxu0 %v744
        %754 = vmatprep.subr.mxu0 0.0
        %755 = vmatpush1.xpose.msra.mxu0 0.0
        %756 = vmatprep.subr.mxu0 0.0
        %757 = vmatpush1.xpose.msra.mxu0 0.0
        %758 = vmatprep.subr.mxu0 0.0
        %759 = vmatpush1.xpose.msra.mxu0 0.0
        %760 = vmatprep.subr.mxu0 0.0
        %761 = vmatpush1.xpose.msra.mxu0 0.0
        %762 = vmatprep.subr.mxu0 0.0
        %763 = vmatpush1.xpose.msra.mxu0 0.0
        %764 = vmatprep.subr.mxu0 0.0
        %765 = vmatpush1.xpose.msra.mxu0 0.0
        %766 = vmatprep.subr.mxu0 0.0
        %767 = vmatpush1.xpose.msra.mxu0 0.0
        %768 = vmatprep.subr.mxu0 0.0
        %769 = vmatpush1.xpose.msra.mxu0 0.0
        %770 = vmatprep.subr.mxu0 0.0
        %771 = vmatpush1.xpose.msra.mxu0 0.0
        %772 = vmatprep.subr.mxu0 0.0
        %773 = vmatpush1.xpose.msra.mxu0 0.0
        %774 = vmatprep.subr.mxu0 0.0
        %775 = vmatpush1.xpose.msra.mxu0 0.0
        %776 = vmatprep.subr.mxu0 0.0
        %777 = vmatpush1.xpose.msra.mxu0 0.0
        %778 = vmatprep.subr.mxu0 0.0
        %779 = vmatpush1.xpose.msra.mxu0 0.0
        %780 = vmatprep.subr.mxu0 0.0
        %781 = vmatpush1.xpose.msra.mxu0 0.0
        %782 = vmatprep.subr.mxu0 0.0
        %783 = vmatpush1.xpose.msra.mxu0 0.0
        %784 = vmatprep.subr.mxu0 0.0
        %785 = vmatpush1.xpose.msra.mxu0 0.0
        %786 = vmatprep.subr.mxu0 0.0
        %787 = vmatpush1.xpose.msra.mxu0 0.0
        %788 = vmatprep.subr.mxu0 0.0
        %789 = vmatpush1.xpose.msra.mxu0 0.0
        %790 = vmatprep.subr.mxu0 0.0
        %791 = vmatpush1.xpose.msra.mxu0 0.0
        %792 = vmatprep.subr.mxu0 0.0
        %793 = vmatpush1.xpose.msra.mxu0 0.0
        %794 = vmatprep.subr.mxu0 0.0
        %795 = vmatpush1.xpose.msra.mxu0 0.0
        %796 = vmatprep.subr.mxu0 0.0
        %797 = vmatpush1.xpose.msra.mxu0 0.0
        %798 = vmatprep.subr.mxu0 0.0
        %799 = vmatpush1.xpose.msra.mxu0 0.0
        %800 = vmatprep.subr.mxu0 0.0
        %801 = vmatpush1.xpose.msra.mxu0 0.0
        %802 = vmatprep.subr.mxu0 0.0
        %803 = vmatpush1.xpose.msra.mxu0 0.0
        %804 = vmatprep.subr.mxu0 0.0
        %805 = vmatpush1.xpose.msra.mxu0 0.0
        %806 = vmatprep.subr.mxu0 0.0
        %807 = vmatpush1.xpose.msra.mxu0 0.0
        %808 = vmatprep.subr.mxu0 0.0
        %809 = vmatpush1.xpose.msra.mxu0 0.0
        %810 = vmatprep.mubr.f32.mxu0 0.0
        %811 = vmatmul.mubr.f32.gmra.mrb[0].mxu0 %v732
        %v812 = vpop.f32.mrb[0].mxu0
        %v813 = vadd.f32 %v729, %v812
        %v814 = vpop.f32.mrb[0].mxu0
        %815 = vdwg.mxu0
        %v816 = vld [vmem:[#allocation12] sm:$0xff]
        %v817 = vld [vmem:[#allocation12 + $0x8] sm:$0xff]
        %v818 = vld [vmem:[#allocation12 + $0x10] sm:$0xff]
        %v819 = vld [vmem:[#allocation12 + $0x18] sm:$0xff]
        %v820 = vld [vmem:[#allocation18] sm:$0x1]
        %v822 = vlaneseq
        %v823 = vshrl.u32 %v822, 7
        %v824 = vsub.s32 0, %v823
        %v825 = vrot.slane %v820, %v824
        %v828 = vsel %vm633, %v621, 0
        %v831 = vsel %vm633, %v816, 0
        %v834 = vsel %vm633, %v817, 0
        %v837 = vsel %vm633, %v818, 0
        %v840 = vsel %vm633, %v819, 0
        %842 = vmatprep.subr.mxu0 0.0
        %843 = vmatpush1.xpose.msra.mxu0 %v831
        %844 = vmatprep.subr.mxu0 0.0
        %845 = vmatpush1.xpose.msra.mxu0 %v834
        %846 = vmatprep.subr.mxu0 0.0
        %847 = vmatpush1.xpose.msra.mxu0 %v837
        %848 = vmatprep.subr.mxu0 0.0
        %849 = vmatpush1.xpose.msra.mxu0 %v840
        %850 = vmatprep.subr.mxu0 0.0
        %851 = vmatpush1.xpose.msra.mxu0 0.0
        %852 = vmatprep.subr.mxu0 0.0
        %853 = vmatpush1.xpose.msra.mxu0 0.0
        %854 = vmatprep.subr.mxu0 0.0
        %855 = vmatpush1.xpose.msra.mxu0 0.0
        %856 = vmatprep.subr.mxu0 0.0
        %857 = vmatpush1.xpose.msra.mxu0 0.0
        %858 = vmatprep.subr.mxu0 0.0
        %859 = vmatpush1.xpose.msra.mxu0 0.0
        %860 = vmatprep.subr.mxu0 0.0
        %861 = vmatpush1.xpose.msra.mxu0 0.0
        %862 = vmatprep.subr.mxu0 0.0
        %863 = vmatpush1.xpose.msra.mxu0 0.0
        %864 = vmatprep.subr.mxu0 0.0
        %865 = vmatpush1.xpose.msra.mxu0 0.0
        %866 = vmatprep.subr.mxu0 0.0
        %867 = vmatpush1.xpose.msra.mxu0 0.0
        %868 = vmatprep.subr.mxu0 0.0
        %869 = vmatpush1.xpose.msra.mxu0 0.0
        %870 = vmatprep.subr.mxu0 0.0
        %871 = vmatpush1.xpose.msra.mxu0 0.0
        %872 = vmatprep.subr.mxu0 0.0
        %873 = vmatpush1.xpose.msra.mxu0 0.0
        %874 = vmatprep.subr.mxu0 0.0
        %875 = vmatpush1.xpose.msra.mxu0 0.0
        %876 = vmatprep.subr.mxu0 0.0
        %877 = vmatpush1.xpose.msra.mxu0 0.0
        %878 = vmatprep.subr.mxu0 0.0
        %879 = vmatpush1.xpose.msra.mxu0 0.0
        %880 = vmatprep.subr.mxu0 0.0
        %881 = vmatpush1.xpose.msra.mxu0 0.0
        %882 = vmatprep.subr.mxu0 0.0
        %883 = vmatpush1.xpose.msra.mxu0 0.0
        %884 = vmatprep.subr.mxu0 0.0
        %885 = vmatpush1.xpose.msra.mxu0 0.0
        %886 = vmatprep.subr.mxu0 0.0
        %887 = vmatpush1.xpose.msra.mxu0 0.0
        %888 = vmatprep.subr.mxu0 0.0
        %889 = vmatpush1.xpose.msra.mxu0 0.0
        %890 = vmatprep.subr.mxu0 0.0
        %891 = vmatpush1.xpose.msra.mxu0 0.0
        %892 = vmatprep.subr.mxu0 0.0
        %893 = vmatpush1.xpose.msra.mxu0 0.0
        %894 = vmatprep.subr.mxu0 0.0
        %895 = vmatpush1.xpose.msra.mxu0 0.0
        %896 = vmatprep.subr.mxu0 0.0
        %897 = vmatpush1.xpose.msra.mxu0 0.0
        %898 = vmatprep.subr.mxu0 0.0
        %899 = vmatpush1.xpose.msra.mxu0 0.0
        %900 = vmatprep.subr.mxu0 0.0
        %901 = vmatpush1.xpose.msra.mxu0 0.0
        %902 = vmatprep.subr.mxu0 0.0
        %903 = vmatpush1.xpose.msra.mxu0 0.0
        %904 = vmatprep.subr.mxu0 0.0
        %905 = vmatpush1.xpose.msra.mxu0 0.0
        %906 = vmatprep.mubr.f32.mxu0 0.0
        %907 = vmatmul.mubr.f32.gmra.mrb[0].mxu0 %v828
        %v908 = vpop.f32.mrb[0].mxu0
        %v909 = vadd.f32 %v825, %v908
        %v910 = vpop.f32.mrb[0].mxu0
        %911 = vdwg.mxu0
        %vm912 = vcmask 64512
        %v914 = vsel %vm912, %v719, 0
        %v917 = vsel %vm912, %v813, 0
        %919 = vmatprep.subr.mxu0 0.0
        %920 = vmatpush1.xpose.msra.mxu0 %v917
        %921 = vmatprep.subr.mxu0 0.0
        %922 = vmatpush1.xpose.msra.mxu0 0.0
        %923 = vmatprep.subr.mxu0 0.0
        %924 = vmatpush1.xpose.msra.mxu0 0.0
        %925 = vmatprep.subr.mxu0 0.0
        %926 = vmatpush1.xpose.msra.mxu0 0.0
        %927 = vmatprep.subr.mxu0 0.0
        %928 = vmatpush1.xpose.msra.mxu0 0.0
        %929 = vmatprep.subr.mxu0 0.0
        %930 = vmatpush1.xpose.msra.mxu0 0.0
        %931 = vmatprep.subr.mxu0 0.0
        %932 = vmatpush1.xpose.msra.mxu0 0.0
        %933 = vmatprep.subr.mxu0 0.0
        %934 = vmatpush1.xpose.msra.mxu0 0.0
        %935 = vmatprep.subr.mxu0 0.0
        %936 = vmatpush1.xpose.msra.mxu0 0.0
        %937 = vmatprep.subr.mxu0 0.0
        %938 = vmatpush1.xpose.msra.mxu0 0.0
        %939 = vmatprep.subr.mxu0 0.0
        %940 = vmatpush1.xpose.msra.mxu0 0.0
        %941 = vmatprep.subr.mxu0 0.0
        %942 = vmatpush1.xpose.msra.mxu0 0.0
        %943 = vmatprep.subr.mxu0 0.0
        %944 = vmatpush1.xpose.msra.mxu0 0.0
        %945 = vmatprep.subr.mxu0 0.0
        %946 = vmatpush1.xpose.msra.mxu0 0.0
        %947 = vmatprep.subr.mxu0 0.0
        %948 = vmatpush1.xpose.msra.mxu0 0.0
        %949 = vmatprep.subr.mxu0 0.0
        %950 = vmatpush1.xpose.msra.mxu0 0.0
        %951 = vmatprep.subr.mxu0 0.0
        %952 = vmatpush1.xpose.msra.mxu0 0.0
        %953 = vmatprep.subr.mxu0 0.0
        %954 = vmatpush1.xpose.msra.mxu0 0.0
        %955 = vmatprep.subr.mxu0 0.0
        %956 = vmatpush1.xpose.msra.mxu0 0.0
        %957 = vmatprep.subr.mxu0 0.0
        %958 = vmatpush1.xpose.msra.mxu0 0.0
        %959 = vmatprep.subr.mxu0 0.0
        %960 = vmatpush1.xpose.msra.mxu0 0.0
        %961 = vmatprep.subr.mxu0 0.0
        %962 = vmatpush1.xpose.msra.mxu0 0.0
        %963 = vmatprep.subr.mxu0 0.0
        %964 = vmatpush1.xpose.msra.mxu0 0.0
        %965 = vmatprep.subr.mxu0 0.0
        %966 = vmatpush1.xpose.msra.mxu0 0.0
        %967 = vmatprep.subr.mxu0 0.0
        %968 = vmatpush1.xpose.msra.mxu0 0.0
        %969 = vmatprep.subr.mxu0 0.0
        %970 = vmatpush1.xpose.msra.mxu0 0.0
        %971 = vmatprep.subr.mxu0 0.0
        %972 = vmatpush1.xpose.msra.mxu0 0.0
        %973 = vmatprep.subr.mxu0 0.0
        %974 = vmatpush1.xpose.msra.mxu0 0.0
        %975 = vmatprep.subr.mxu0 0.0
        %976 = vmatpush1.xpose.msra.mxu0 0.0
        %977 = vmatprep.subr.mxu0 0.0
        %978 = vmatpush1.xpose.msra.mxu0 0.0
        %979 = vmatprep.subr.mxu0 0.0
        %980 = vmatpush1.xpose.msra.mxu0 0.0
        %981 = vmatprep.subr.mxu0 0.0
        %982 = vmatpush1.xpose.msra.mxu0 0.0
        %983 = vmatprep.mubr.f32.mxu0 0.0
        %984 = vmatmul.mubr.f32.gmra.mrb[0].mxu0 %v914
        %v985 = vpop.f32.mrb[0].mxu0
        %v986 = vadd.f32 0.0, %v985
        %v987 = vpop.f32.mrb[0].mxu0
        %988 = vdwg.mxu0
        %v989 = vsel %vm912, %v986, -inf
        %990 = vmax.xlane.f32.xlu0 %v989
        %v991 = vpop.xlane.xlu0 %990
        %v992 = vsub.f32 %v986, %v991
        %v993 = vmul.f32 %v992, 1.442695
        %v994 = vpow.pop %v993
        %v995 = vsel %vm912, %v994, 0.0
        %996 = vadd.xlane.f32.xlu0 %v995
        %v997 = vpop.xlane.xlu0 %996
        %v998 = vrcp.pop %v997
        %v999 = vmul.f32 %v994, %v998
        %1000 = vst.msk [vmem:[%s618] sm:$0xff] %vm912, %v999
        %v1002 = vsel %vm912, %v999, 0
        %1004 = vmatprep.subr.mxu0 0.0
        %1005 = vmatpush1.msra.mxu0 %v909
        %1006 = vmatprep.subr.mxu0 0.0
        %1007 = vmatpush1.msra.mxu0 0.0
        %1008 = vmatprep.subr.mxu0 0.0
        %1009 = vmatpush1.msra.mxu0 0.0
        %1010 = vmatprep.subr.mxu0 0.0
        %1011 = vmatpush1.msra.mxu0 0.0
        %1012 = vmatprep.subr.mxu0 0.0
        %1013 = vmatpush1.msra.mxu0 0.0
        %1014 = vmatprep.subr.mxu0 0.0
        %1015 = vmatpush1.msra.mxu0 0.0
        %1016 = vmatprep.subr.mxu0 0.0
        %1017 = vmatpush1.msra.mxu0 0.0
        %1018 = vmatprep.subr.mxu0 0.0
        %1019 = vmatpush1.msra.mxu0 0.0
        %1020 = vmatprep.subr.mxu0 0.0
        %1021 = vmatpush1.msra.mxu0 0.0
        %1022 = vmatprep.subr.mxu0 0.0
        %1023 = vmatpush1.msra.mxu0 0.0
        %1024 = vmatprep.subr.mxu0 0.0
        %1025 = vmatpush1.msra.mxu0 0.0
        %1026 = vmatprep.subr.mxu0 0.0
        %1027 = vmatpush1.msra.mxu0 0.0
        %1028 = vmatprep.subr.mxu0 0.0
        %1029 = vmatpush1.msra.mxu0 0.0
        %1030 = vmatprep.subr.mxu0 0.0
        %1031 = vmatpush1.msra.mxu0 0.0
        %1032 = vmatprep.subr.mxu0 0.0
        %1033 = vmatpush1.msra.mxu0 0.0
        %1034 = vmatprep.subr.mxu0 0.0
        %1035 = vmatpush1.msra.mxu0 0.0
        %1036 = vmatprep.subr.mxu0 0.0
        %1037 = vmatpush1.msra.mxu0 0.0
        %1038 = vmatprep.subr.mxu0 0.0
        %1039 = vmatpush1.msra.mxu0 0.0
        %1040 = vmatprep.subr.mxu0 0.0
        %1041 = vmatpush1.msra.mxu0 0.0
        %1042 = vmatprep.subr.mxu0 0.0
        %1043 = vmatpush1.msra.mxu0 0.0
        %1044 = vmatprep.subr.mxu0 0.0
        %1045 = vmatpush1.msra.mxu0 0.0
        %1046 = vmatprep.subr.mxu0 0.0
        %1047 = vmatpush1.msra.mxu0 0.0
        %1048 = vmatprep.subr.mxu0 0.0
        %1049 = vmatpush1.msra.mxu0 0.0
        %1050 = vmatprep.subr.mxu0 0.0
        %1051 = vmatpush1.msra.mxu0 0.0
        %1052 = vmatprep.subr.mxu0 0.0
        %1053 = vmatpush1.msra.mxu0 0.0
        %1054 = vmatprep.subr.mxu0 0.0
        %1055 = vmatpush1.msra.mxu0 0.0
        %1056 = vmatprep.subr.mxu0 0.0
        %1057 = vmatpush1.msra.mxu0 0.0
        %1058 = vmatprep.subr.mxu0 0.0
        %1059 = vmatpush1.msra.mxu0 0.0
        %1060 = vmatprep.subr.mxu0 0.0
        %1061 = vmatpush1.msra.mxu0 0.0
        %1062 = vmatprep.subr.mxu0 0.0
        %1063 = vmatpush1.msra.mxu0 0.0
        %1064 = vmatprep.subr.mxu0 0.0
        %1065 = vmatpush1.msra.mxu0 0.0
        %1066 = vmatprep.subr.mxu0 0.0
        %1067 = vmatpush1.msra.mxu0 0.0
        %1068 = vmatprep.mubr.f32.mxu0 0.0
        %1069 = vmatmul.mubr.f32.gmra.mrb[0].mxu0 %v1002
        %v1070 = vpop.f32.mrb[0].mxu0
        %v1071 = vadd.f32 0.0, %v1070
        %v1072 = vpop.f32.mrb[0].mxu0
        %1073 = vdwg.mxu0
        %1074 = vst.msk [vmem:[#allocation2] sm:$0xff] %vm912, %v1071
        %1075 = vrot.lane.b32.xlu0 %v719, 120
        %v1076 = vpop.permute.xlu0 %1075
        %1077 = vrot.lane.b32.xlu0 %v813, 120
        %v1078 = vpop.permute.xlu0 %1077
        %v1079 = vsel %vm912, %v1076, 0
        %v1081 = vsel %vm912, %v1078, 0
        %1083 = vmatprep.subr.mxu0 0.0
        %1084 = vmatpush1.xpose.msra.mxu0 %v1081
        %1085 = vmatprep.subr.mxu0 0.0
        %1086 = vmatpush1.xpose.msra.mxu0 0.0
        %1087 = vmatprep.subr.mxu0 0.0
        %1088 = vmatpush1.xpose.msra.mxu0 0.0
        %1089 = vmatprep.subr.mxu0 0.0
        %1090 = vmatpush1.xpose.msra.mxu0 0.0
        %1091 = vmatprep.subr.mxu0 0.0
        %1092 = vmatpush1.xpose.msra.mxu0 0.0
        %1093 = vmatprep.subr.mxu0 0.0
        %1094 = vmatpush1.xpose.msra.mxu0 0.0
        %1095 = vmatprep.subr.mxu0 0.0
        %1096 = vmatpush1.xpose.msra.mxu0 0.0
        %1097 = vmatprep.subr.mxu0 0.0
        %1098 = vmatpush1.xpose.msra.mxu0 0.0
        %1099 = vmatprep.subr.mxu0 0.0
        %1100 = vmatpush1.xpose.msra.mxu0 0.0
        %1101 = vmatprep.subr.mxu0 0.0
        %1102 = vmatpush1.xpose.msra.mxu0 0.0
        %1103 = vmatprep.subr.mxu0 0.0
        %1104 = vmatpush1.xpose.msra.mxu0 0.0
        %1105 = vmatprep.subr.mxu0 0.0
        %1106 = vmatpush1.xpose.msra.mxu0 0.0
        %1107 = vmatprep.subr.mxu0 0.0
        %1108 = vmatpush1.xpose.msra.mxu0 0.0
        %1109 = vmatprep.subr.mxu0 0.0
        %1110 = vmatpush1.xpose.msra.mxu0 0.0
        %1111 = vmatprep.subr.mxu0 0.0
        %1112 = vmatpush1.xpose.msra.mxu0 0.0
        %1113 = vmatprep.subr.mxu0 0.0
        %1114 = vmatpush1.xpose.msra.mxu0 0.0
        %1115 = vmatprep.subr.mxu0 0.0
        %1116 = vmatpush1.xpose.msra.mxu0 0.0
        %1117 = vmatprep.subr.mxu0 0.0
        %1118 = vmatpush1.xpose.msra.mxu0 0.0
        %1119 = vmatprep.subr.mxu0 0.0
        %1120 = vmatpush1.xpose.msra.mxu0 0.0
        %1121 = vmatprep.subr.mxu0 0.0
        %1122 = vmatpush1.xpose.msra.mxu0 0.0
        %1123 = vmatprep.subr.mxu0 0.0
        %1124 = vmatpush1.xpose.msra.mxu0 0.0
        %1125 = vmatprep.subr.mxu0 0.0
        %1126 = vmatpush1.xpose.msra.mxu0 0.0
        %1127 = vmatprep.subr.mxu0 0.0
        %1128 = vmatpush1.xpose.msra.mxu0 0.0
        %1129 = vmatprep.subr.mxu0 0.0
        %1130 = vmatpush1.xpose.msra.mxu0 0.0
        %1131 = vmatprep.subr.mxu0 0.0
        %1132 = vmatpush1.xpose.msra.mxu0 0.0
        %1133 = vmatprep.subr.mxu0 0.0
        %1134 = vmatpush1.xpose.msra.mxu0 0.0
        %1135 = vmatprep.subr.mxu0 0.0
        %1136 = vmatpush1.xpose.msra.mxu0 0.0
        %1137 = vmatprep.subr.mxu0 0.0
        %1138 = vmatpush1.xpose.msra.mxu0 0.0
        %1139 = vmatprep.subr.mxu0 0.0
        %1140 = vmatpush1.xpose.msra.mxu0 0.0
        %1141 = vmatprep.subr.mxu0 0.0
        %1142 = vmatpush1.xpose.msra.mxu0 0.0
        %1143 = vmatprep.subr.mxu0 0.0
        %1144 = vmatpush1.xpose.msra.mxu0 0.0
        %1145 = vmatprep.subr.mxu0 0.0
        %1146 = vmatpush1.xpose.msra.mxu0 0.0
        %1147 = vmatprep.mubr.f32.mxu0 0.0
        %1148 = vmatmul.mubr.f32.gmra.mrb[0].mxu0 %v1079
        %v1149 = vpop.f32.mrb[0].mxu0
        %v1150 = vadd.f32 0.0, %v1149
        %v1151 = vpop.f32.mrb[0].mxu0
        %1152 = vdwg.mxu0
        %v1153 = vsel %vm912, %v1150, -inf
        %1154 = vmax.xlane.f32.xlu0 %v1153
        %v1155 = vpop.xlane.xlu0 %1154
        %v1156 = vsub.f32 %v1150, %v1155
        %v1157 = vmul.f32 %v1156, 1.442695
        %v1158 = vpow.pop %v1157
        %v1159 = vsel %vm912, %v1158, 0.0
        %1160 = vadd.xlane.f32.xlu0 %v1159
        %v1161 = vpop.xlane.xlu0 %1160
        %v1162 = vrcp.pop %v1161
        %v1163 = vmul.f32 %v1158, %v1162
        %s1164 = scalar_lea.vmem %s618, 8 [#allocation22]
        %1165 = vst.msk [vmem:[%s1164] sm:$0xff] %vm912, %v1163
        %1167 = vrot.lane.b32.xlu0 %v909, 120
        %v1168 = vpop.permute.xlu0 %1167
        %v1171 = vsel %vm912, %v1163, 0
        %1173 = vmatprep.subr.mxu0 0.0
        %1174 = vmatpush1.msra.mxu0 %v1168
        %1175 = vmatprep.subr.mxu0 0.0
        %1176 = vmatpush1.msra.mxu0 0.0
        %1177 = vmatprep.subr.mxu0 0.0
        %1178 = vmatpush1.msra.mxu0 0.0
        %1179 = vmatprep.subr.mxu0 0.0
        %1180 = vmatpush1.msra.mxu0 0.0
        %1181 = vmatprep.subr.mxu0 0.0
        %1182 = vmatpush1.msra.mxu0 0.0
        %1183 = vmatprep.subr.mxu0 0.0
        %1184 = vmatpush1.msra.mxu0 0.0
        %1185 = vmatprep.subr.mxu0 0.0
        %1186 = vmatpush1.msra.mxu0 0.0
        %1187 = vmatprep.subr.mxu0 0.0
        %1188 = vmatpush1.msra.mxu0 0.0
        %1189 = vmatprep.subr.mxu0 0.0
        %1190 = vmatpush1.msra.mxu0 0.0
        %1191 = vmatprep.subr.mxu0 0.0
        %1192 = vmatpush1.msra.mxu0 0.0
        %1193 = vmatprep.subr.mxu0 0.0
        %1194 = vmatpush1.msra.mxu0 0.0
        %1195 = vmatprep.subr.mxu0 0.0
        %1196 = vmatpush1.msra.mxu0 0.0
        %1197 = vmatprep.subr.mxu0 0.0
        %1198 = vmatpush1.msra.mxu0 0.0
        %1199 = vmatprep.subr.mxu0 0.0
        %1200 = vmatpush1.msra.mxu0 0.0
        %1201 = vmatprep.subr.mxu0 0.0
        %1202 = vmatpush1.msra.mxu0 0.0
        %1203 = vmatprep.subr.mxu0 0.0
        %1204 = vmatpush1.msra.mxu0 0.0
        %1205 = vmatprep.subr.mxu0 0.0
        %1206 = vmatpush1.msra.mxu0 0.0
        %1207 = vmatprep.subr.mxu0 0.0
        %1208 = vmatpush1.msra.mxu0 0.0
        %1209 = vmatprep.subr.mxu0 0.0
        %1210 = vmatpush1.msra.mxu0 0.0
        %1211 = vmatprep.subr.mxu0 0.0
        %1212 = vmatpush1.msra.mxu0 0.0
        %1213 = vmatprep.subr.mxu0 0.0
        %1214 = vmatpush1.msra.mxu0 0.0
        %1215 = vmatprep.subr.mxu0 0.0
        %1216 = vmatpush1.msra.mxu0 0.0
        %1217 = vmatprep.subr.mxu0 0.0
        %1218 = vmatpush1.msra.mxu0 0.0
        %1219 = vmatprep.subr.mxu0 0.0
        %1220 = vmatpush1.msra.mxu0 0.0
        %1221 = vmatprep.subr.mxu0 0.0
        %1222 = vmatpush1.msra.mxu0 0.0
        %1223 = vmatprep.subr.mxu0 0.0
        %1224 = vmatpush1.msra.mxu0 0.0
        %1225 = vmatprep.subr.mxu0 0.0
        %1226 = vmatpush1.msra.mxu0 0.0
        %1227 = vmatprep.subr.mxu0 0.0
        %1228 = vmatpush1.msra.mxu0 0.0
        %1229 = vmatprep.subr.mxu0 0.0
        %1230 = vmatpush1.msra.mxu0 0.0
        %1231 = vmatprep.subr.mxu0 0.0
        %1232 = vmatpush1.msra.mxu0 0.0
        %1233 = vmatprep.subr.mxu0 0.0
        %1234 = vmatpush1.msra.mxu0 0.0
        %1235 = vmatprep.subr.mxu0 0.0
        %1236 = vmatpush1.msra.mxu0 0.0
        %1237 = vmatprep.mubr.f32.mxu0 0.0
        %1238 = vmatmul.mubr.f32.gmra.mrb[0].mxu0 %v1171
        %v1239 = vpop.f32.mrb[0].mxu0
        %v1240 = vadd.f32 0.0, %v1239
        %v1241 = vpop.f32.mrb[0].mxu0
        %1242 = vdwg.mxu0
        %1244 = vrot.lane.b32.xlu0 %v1240, 8
        %v1245 = vpop.permute.xlu0 %1244
        %vm1247 = vcmask 130112
        %1248 = vst.msk [vmem:[#allocation2] sm:$0xff] %vm1247, %v1245
        %1249 = vrot.lane.b32.xlu0 %v719, 112
        %v1250 = vpop.permute.xlu0 %1249
        %1251 = vrot.lane.b32.xlu0 %v813, 112
        %v1252 = vpop.permute.xlu0 %1251
        %v1253 = vsel %vm912, %v1250, 0
        %v1255 = vsel %vm912, %v1252, 0
        %1257 = vmatprep.subr.mxu0 0.0
        %1258 = vmatpush1.xpose.msra.mxu0 %v1255
        %1259 = vmatprep.subr.mxu0 0.0
        %1260 = vmatpush1.xpose.msra.mxu0 0.0
        %1261 = vmatprep.subr.mxu0 0.0
        %1262 = vmatpush1.xpose.msra.mxu0 0.0
        %1263 = vmatprep.subr.mxu0 0.0
        %1264 = vmatpush1.xpose.msra.mxu0 0.0
        %1265 = vmatprep.subr.mxu0 0.0
        %1266 = vmatpush1.xpose.msra.mxu0 0.0
        %1267 = vmatprep.subr.mxu0 0.0
        %1268 = vmatpush1.xpose.msra.mxu0 0.0
        %1269 = vmatprep.subr.mxu0 0.0
        %1270 = vmatpush1.xpose.msra.mxu0 0.0
        %1271 = vmatprep.subr.mxu0 0.0
        %1272 = vmatpush1.xpose.msra.mxu0 0.0
        %1273 = vmatprep.subr.mxu0 0.0
        %1274 = vmatpush1.xpose.msra.mxu0 0.0
        %1275 = vmatprep.subr.mxu0 0.0
        %1276 = vmatpush1.xpose.msra.mxu0 0.0
        %1277 = vmatprep.subr.mxu0 0.0
        %1278 = vmatpush1.xpose.msra.mxu0 0.0
        %1279 = vmatprep.subr.mxu0 0.0
        %1280 = vmatpush1.xpose.msra.mxu0 0.0
        %1281 = vmatprep.subr.mxu0 0.0
        %1282 = vmatpush1.xpose.msra.mxu0 0.0
        %1283 = vmatprep.subr.mxu0 0.0
        %1284 = vmatpush1.xpose.msra.mxu0 0.0
        %1285 = vmatprep.subr.mxu0 0.0
        %1286 = vmatpush1.xpose.msra.mxu0 0.0
        %1287 = vmatprep.subr.mxu0 0.0
        %1288 = vmatpush1.xpose.msra.mxu0 0.0
        %1289 = vmatprep.subr.mxu0 0.0
        %1290 = vmatpush1.xpose.msra.mxu0 0.0
        %1291 = vmatprep.subr.mxu0 0.0
        %1292 = vmatpush1.xpose.msra.mxu0 0.0
        %1293 = vmatprep.subr.mxu0 0.0
        %1294 = vmatpush1.xpose.msra.mxu0 0.0
        %1295 = vmatprep.subr.mxu0 0.0
        %1296 = vmatpush1.xpose.msra.mxu0 0.0
        %1297 = vmatprep.subr.mxu0 0.0
        %1298 = vmatpush1.xpose.msra.mxu0 0.0
        %1299 = vmatprep.subr.mxu0 0.0
        %1300 = vmatpush1.xpose.msra.mxu0 0.0
        %1301 = vmatprep.subr.mxu0 0.0
        %1302 = vmatpush1.xpose.msra.mxu0 0.0
        %1303 = vmatprep.subr.mxu0 0.0
        %1304 = vmatpush1.xpose.msra.mxu0 0.0
        %1305 = vmatprep.subr.mxu0 0.0
        %1306 = vmatpush1.xpose.msra.mxu0 0.0
        %1307 = vmatprep.subr.mxu0 0.0
        %1308 = vmatpush1.xpose.msra.mxu0 0.0
        %1309 = vmatprep.subr.mxu0 0.0
        %1310 = vmatpush1.xpose.msra.mxu0 0.0
        %1311 = vmatprep.subr.mxu0 0.0
        %1312 = vmatpush1.xpose.msra.mxu0 0.0
        %1313 = vmatprep.subr.mxu0 0.0
        %1314 = vmatpush1.xpose.msra.mxu0 0.0
        %1315 = vmatprep.subr.mxu0 0.0
        %1316 = vmatpush1.xpose.msra.mxu0 0.0
        %1317 = vmatprep.subr.mxu0 0.0
        %1318 = vmatpush1.xpose.msra.mxu0 0.0
        %1319 = vmatprep.subr.mxu0 0.0
        %1320 = vmatpush1.xpose.msra.mxu0 0.0
        %1321 = vmatprep.mubr.f32.mxu0 0.0
        %1322 = vmatmul.mubr.f32.gmra.mrb[0].mxu0 %v1253
        %v1323 = vpop.f32.mrb[0].mxu0
        %v1324 = vadd.f32 0.0, %v1323
        %v1325 = vpop.f32.mrb[0].mxu0
        %1326 = vdwg.mxu0
        %v1327 = vsel %vm912, %v1324, -inf
        %1328 = vmax.xlane.f32.xlu0 %v1327
        %v1329 = vpop.xlane.xlu0 %1328
        %v1330 = vsub.f32 %v1324, %v1329
        %v1331 = vmul.f32 %v1330, 1.442695
        %v1332 = vpow.pop %v1331
        %v1333 = vsel %vm912, %v1332, 0.0
        %1334 = vadd.xlane.f32.xlu0 %v1333
        %v1335 = vpop.xlane.xlu0 %1334
        %v1336 = vrcp.pop %v1335
        %v1337 = vmul.f32 %v1332, %v1336
        %s1338 = scalar_lea.vmem %s618, 16 [#allocation22]
        %1339 = vst.msk [vmem:[%s1338] sm:$0xff] %vm912, %v1337
        %1340 = vrot.lane.b32.xlu0 %v909, 112
        %v1341 = vpop.permute.xlu0 %1340
        %v1344 = vsel %vm912, %v1337, 0
        %1346 = vmatprep.subr.mxu0 0.0
        %1347 = vmatpush1.msra.mxu0 %v1341
        %1348 = vmatprep.subr.mxu0 0.0
        %1349 = vmatpush1.msra.mxu0 0.0
        %1350 = vmatprep.subr.mxu0 0.0
        %1351 = vmatpush1.msra.mxu0 0.0
        %1352 = vmatprep.subr.mxu0 0.0
        %1353 = vmatpush1.msra.mxu0 0.0
        %1354 = vmatprep.subr.mxu0 0.0
        %1355 = vmatpush1.msra.mxu0 0.0
        %1356 = vmatprep.subr.mxu0 0.0
        %1357 = vmatpush1.msra.mxu0 0.0
        %1358 = vmatprep.subr.mxu0 0.0
        %1359 = vmatpush1.msra.mxu0 0.0
        %1360 = vmatprep.subr.mxu0 0.0
        %1361 = vmatpush1.msra.mxu0 0.0
        %1362 = vmatprep.subr.mxu0 0.0
        %1363 = vmatpush1.msra.mxu0 0.0
        %1364 = vmatprep.subr.mxu0 0.0
        %1365 = vmatpush1.msra.mxu0 0.0
        %1366 = vmatprep.subr.mxu0 0.0
        %1367 = vmatpush1.msra.mxu0 0.0
        %1368 = vmatprep.subr.mxu0 0.0
        %1369 = vmatpush1.msra.mxu0 0.0
        %1370 = vmatprep.subr.mxu0 0.0
        %1371 = vmatpush1.msra.mxu0 0.0
        %1372 = vmatprep.subr.mxu0 0.0
        %1373 = vmatpush1.msra.mxu0 0.0
        %1374 = vmatprep.subr.mxu0 0.0
        %1375 = vmatpush1.msra.mxu0 0.0
        %1376 = vmatprep.subr.mxu0 0.0
        %1377 = vmatpush1.msra.mxu0 0.0
        %1378 = vmatprep.subr.mxu0 0.0
        %1379 = vmatpush1.msra.mxu0 0.0
        %1380 = vmatprep.subr.mxu0 0.0
        %1381 = vmatpush1.msra.mxu0 0.0
        %1382 = vmatprep.subr.mxu0 0.0
        %1383 = vmatpush1.msra.mxu0 0.0
        %1384 = vmatprep.subr.mxu0 0.0
        %1385 = vmatpush1.msra.mxu0 0.0
        %1386 = vmatprep.subr.mxu0 0.0
        %1387 = vmatpush1.msra.mxu0 0.0
        %1388 = vmatprep.subr.mxu0 0.0
        %1389 = vmatpush1.msra.mxu0 0.0
        %1390 = vmatprep.subr.mxu0 0.0
        %1391 = vmatpush1.msra.mxu0 0.0
        %1392 = vmatprep.subr.mxu0 0.0
        %1393 = vmatpush1.msra.mxu0 0.0
        %1394 = vmatprep.subr.mxu0 0.0
        %1395 = vmatpush1.msra.mxu0 0.0
        %1396 = vmatprep.subr.mxu0 0.0
        %1397 = vmatpush1.msra.mxu0 0.0
        %1398 = vmatprep.subr.mxu0 0.0
        %1399 = vmatpush1.msra.mxu0 0.0
        %1400 = vmatprep.subr.mxu0 0.0
        %1401 = vmatpush1.msra.mxu0 0.0
        %1402 = vmatprep.subr.mxu0 0.0
        %1403 = vmatpush1.msra.mxu0 0.0
        %1404 = vmatprep.subr.mxu0 0.0
        %1405 = vmatpush1.msra.mxu0 0.0
        %1406 = vmatprep.subr.mxu0 0.0
        %1407 = vmatpush1.msra.mxu0 0.0
        %1408 = vmatprep.subr.mxu0 0.0
        %1409 = vmatpush1.msra.mxu0 0.0
        %1410 = vmatprep.mubr.f32.mxu0 0.0
        %1411 = vmatmul.mubr.f32.gmra.mrb[0].mxu0 %v1344
        %v1412 = vpop.f32.mrb[0].mxu0
        %v1413 = vadd.f32 0.0, %v1412
        %v1414 = vpop.f32.mrb[0].mxu0
        %1415 = vdwg.mxu0
        %1417 = vrot.lane.b32.xlu0 %v1413, 16
        %v1418 = vpop.permute.xlu0 %1417
        %vm1420 = vcmask 195712
        %1421 = vst.msk [vmem:[#allocation2] sm:$0xff] %vm1420, %v1418
        %1422 = vrot.lane.b32.xlu0 %v719, 104
        %v1423 = vpop.permute.xlu0 %1422
        %1424 = vrot.lane.b32.xlu0 %v813, 104
        %v1425 = vpop.permute.xlu0 %1424
        %v1426 = vsel %vm912, %v1423, 0
        %v1428 = vsel %vm912, %v1425, 0
        %1430 = vmatprep.subr.mxu0 0.0
        %1431 = vmatpush1.xpose.msra.mxu0 %v1428
        %1432 = vmatprep.subr.mxu0 0.0
        %1433 = vmatpush1.xpose.msra.mxu0 0.0
        %1434 = vmatprep.subr.mxu0 0.0
        %1435 = vmatpush1.xpose.msra.mxu0 0.0
        %1436 = vmatprep.subr.mxu0 0.0
        %1437 = vmatpush1.xpose.msra.mxu0 0.0
        %1438 = vmatprep.subr.mxu0 0.0
        %1439 = vmatpush1.xpose.msra.mxu0 0.0
        %1440 = vmatprep.subr.mxu0 0.0
        %1441 = vmatpush1.xpose.msra.mxu0 0.0
        %1442 = vmatprep.subr.mxu0 0.0
        %1443 = vmatpush1.xpose.msra.mxu0 0.0
        %1444 = vmatprep.subr.mxu0 0.0
        %1445 = vmatpush1.xpose.msra.mxu0 0.0
        %1446 = vmatprep.subr.mxu0 0.0
        %1447 = vmatpush1.xpose.msra.mxu0 0.0
        %1448 = vmatprep.subr.mxu0 0.0
        %1449 = vmatpush1.xpose.msra.mxu0 0.0
        %1450 = vmatprep.subr.mxu0 0.0
        %1451 = vmatpush1.xpose.msra.mxu0 0.0
        %1452 = vmatprep.subr.mxu0 0.0
        %1453 = vmatpush1.xpose.msra.mxu0 0.0
        %1454 = vmatprep.subr.mxu0 0.0
        %1455 = vmatpush1.xpose.msra.mxu0 0.0
        %1456 = vmatprep.subr.mxu0 0.0
        %1457 = vmatpush1.xpose.msra.mxu0 0.0
        %1458 = vmatprep.subr.mxu0 0.0
        %1459 = vmatpush1.xpose.msra.mxu0 0.0
        %1460 = vmatprep.subr.mxu0 0.0
        %1461 = vmatpush1.xpose.msra.mxu0 0.0
        %1462 = vmatprep.subr.mxu0 0.0
        %1463 = vmatpush1.xpose.msra.mxu0 0.0
        %1464 = vmatprep.subr.mxu0 0.0
        %1465 = vmatpush1.xpose.msra.mxu0 0.0
        %1466 = vmatprep.subr.mxu0 0.0
        %1467 = vmatpush1.xpose.msra.mxu0 0.0
        %1468 = vmatprep.subr.mxu0 0.0
        %1469 = vmatpush1.xpose.msra.mxu0 0.0
        %1470 = vmatprep.subr.mxu0 0.0
        %1471 = vmatpush1.xpose.msra.mxu0 0.0
        %1472 = vmatprep.subr.mxu0 0.0
        %1473 = vmatpush1.xpose.msra.mxu0 0.0
        %1474 = vmatprep.subr.mxu0 0.0
        %1475 = vmatpush1.xpose.msra.mxu0 0.0
        %1476 = vmatprep.subr.mxu0 0.0
        %1477 = vmatpush1.xpose.msra.mxu0 0.0
        %1478 = vmatprep.subr.mxu0 0.0
        %1479 = vmatpush1.xpose.msra.mxu0 0.0
        %1480 = vmatprep.subr.mxu0 0.0
        %1481 = vmatpush1.xpose.msra.mxu0 0.0
        %1482 = vmatprep.subr.mxu0 0.0
        %1483 = vmatpush1.xpose.msra.mxu0 0.0
        %1484 = vmatprep.subr.mxu0 0.0
        %1485 = vmatpush1.xpose.msra.mxu0 0.0
        %1486 = vmatprep.subr.mxu0 0.0
        %1487 = vmatpush1.xpose.msra.mxu0 0.0
        %1488 = vmatprep.subr.mxu0 0.0
        %1489 = vmatpush1.xpose.msra.mxu0 0.0
        %1490 = vmatprep.subr.mxu0 0.0
        %1491 = vmatpush1.xpose.msra.mxu0 0.0
        %1492 = vmatprep.subr.mxu0 0.0
        %1493 = vmatpush1.xpose.msra.mxu0 0.0
        %1494 = vmatprep.mubr.f32.mxu0 0.0
        %1495 = vmatmul.mubr.f32.gmra.mrb[0].mxu0 %v1426
        %v1496 = vpop.f32.mrb[0].mxu0
        %v1497 = vadd.f32 0.0, %v1496
        %v1498 = vpop.f32.mrb[0].mxu0
        %1499 = vdwg.mxu0
        %v1500 = vsel %vm912, %v1497, -inf
        %1501 = vmax.xlane.f32.xlu0 %v1500
        %v1502 = vpop.xlane.xlu0 %1501
        %v1503 = vsub.f32 %v1497, %v1502
        %v1504 = vmul.f32 %v1503, 1.442695
        %v1505 = vpow.pop %v1504
        %v1506 = vsel %vm912, %v1505, 0.0
        %1507 = vadd.xlane.f32.xlu0 %v1506
        %v1508 = vpop.xlane.xlu0 %1507
        %v1509 = vrcp.pop %v1508
        %v1510 = vmul.f32 %v1505, %v1509
        %s1511 = scalar_lea.vmem %s618, 24 [#allocation22]
        %1512 = vst.msk [vmem:[%s1511] sm:$0xff] %vm912, %v1510
        %1513 = vrot.lane.b32.xlu0 %v909, 104
        %v1514 = vpop.permute.xlu0 %1513
        %v1517 = vsel %vm912, %v1510, 0
        %1519 = vmatprep.subr.mxu0 0.0
        %1520 = vmatpush1.msra.mxu0 %v1514
        %1521 = vmatprep.subr.mxu0 0.0
        %1522 = vmatpush1.msra.mxu0 0.0
        %1523 = vmatprep.subr.mxu0 0.0
        %1524 = vmatpush1.msra.mxu0 0.0
        %1525 = vmatprep.subr.mxu0 0.0
        %1526 = vmatpush1.msra.mxu0 0.0
        %1527 = vmatprep.subr.mxu0 0.0
        %1528 = vmatpush1.msra.mxu0 0.0
        %1529 = vmatprep.subr.mxu0 0.0
        %1530 = vmatpush1.msra.mxu0 0.0
        %1531 = vmatprep.subr.mxu0 0.0
        %1532 = vmatpush1.msra.mxu0 0.0
        %1533 = vmatprep.subr.mxu0 0.0
        %1534 = vmatpush1.msra.mxu0 0.0
        %1535 = vmatprep.subr.mxu0 0.0
        %1536 = vmatpush1.msra.mxu0 0.0
        %1537 = vmatprep.subr.mxu0 0.0
        %1538 = vmatpush1.msra.mxu0 0.0
        %1539 = vmatprep.subr.mxu0 0.0
        %1540 = vmatpush1.msra.mxu0 0.0
        %1541 = vmatprep.subr.mxu0 0.0
        %1542 = vmatpush1.msra.mxu0 0.0
        %1543 = vmatprep.subr.mxu0 0.0
        %1544 = vmatpush1.msra.mxu0 0.0
        %1545 = vmatprep.subr.mxu0 0.0
        %1546 = vmatpush1.msra.mxu0 0.0
        %1547 = vmatprep.subr.mxu0 0.0
        %1548 = vmatpush1.msra.mxu0 0.0
        %1549 = vmatprep.subr.mxu0 0.0
        %1550 = vmatpush1.msra.mxu0 0.0
        %1551 = vmatprep.subr.mxu0 0.0
        %1552 = vmatpush1.msra.mxu0 0.0
        %1553 = vmatprep.subr.mxu0 0.0
        %1554 = vmatpush1.msra.mxu0 0.0
        %1555 = vmatprep.subr.mxu0 0.0
        %1556 = vmatpush1.msra.mxu0 0.0
        %1557 = vmatprep.subr.mxu0 0.0
        %1558 = vmatpush1.msra.mxu0 0.0
        %1559 = vmatprep.subr.mxu0 0.0
        %1560 = vmatpush1.msra.mxu0 0.0
        %1561 = vmatprep.subr.mxu0 0.0
        %1562 = vmatpush1.msra.mxu0 0.0
        %1563 = vmatprep.subr.mxu0 0.0
        %1564 = vmatpush1.msra.mxu0 0.0
        %1565 = vmatprep.subr.mxu0 0.0
        %1566 = vmatpush1.msra.mxu0 0.0
        %1567 = vmatprep.subr.mxu0 0.0
        %1568 = vmatpush1.msra.mxu0 0.0
        %1569 = vmatprep.subr.mxu0 0.0
        %1570 = vmatpush1.msra.mxu0 0.0
        %1571 = vmatprep.subr.mxu0 0.0
        %1572 = vmatpush1.msra.mxu0 0.0
        %1573 = vmatprep.subr.mxu0 0.0
        %1574 = vmatpush1.msra.mxu0 0.0
        %1575 = vmatprep.subr.mxu0 0.0
        %1576 = vmatpush1.msra.mxu0 0.0
        %1577 = vmatprep.subr.mxu0 0.0
        %1578 = vmatpush1.msra.mxu0 0.0
        %1579 = vmatprep.subr.mxu0 0.0
        %1580 = vmatpush1.msra.mxu0 0.0
        %1581 = vmatprep.subr.mxu0 0.0
        %1582 = vmatpush1.msra.mxu0 0.0
        %1583 = vmatprep.mubr.f32.mxu0 0.0
        %1584 = vmatmul.mubr.f32.gmra.mrb[0].mxu0 %v1517
        %v1585 = vpop.f32.mrb[0].mxu0
        %v1586 = vadd.f32 0.0, %v1585
        %v1587 = vpop.f32.mrb[0].mxu0
        %1588 = vdwg.mxu0
        %1590 = vrot.lane.b32.xlu0 %v1586, 24
        %v1591 = vpop.permute.xlu0 %1590
        %vm1593 = vcmask 261312
        %1594 = vst.msk [vmem:[#allocation2] sm:$0xff] %vm1593, %v1591
        %v1595 = vld [vmem:[#allocation2] sm:$0xff]
        %v1596 = vld [vmem:[#allocation14] sm:$0xff]
        %v1597 = vld [vmem:[#allocation14 + $0x8] sm:$0xff]
        %v1598 = vld [vmem:[#allocation14 + $0x10] sm:$0xff]
        %v1599 = vld [vmem:[#allocation14 + $0x18] sm:$0xff]
        %v1600 = vld [vmem:[#allocation20] sm:$0x1]
        %v1602 = vlaneseq
        %v1603 = vshrl.u32 %v1602, 7
        %v1604 = vsub.s32 0, %v1603
        %v1605 = vrot.slane %v1600, %v1604
        %v1608 = vsel %vm633, %v1595, 0
        %v1611 = vsel %vm633, %v1596, 0
        %v1614 = vsel %vm633, %v1597, 0
        %v1617 = vsel %vm633, %v1598, 0
        %v1620 = vsel %vm633, %v1599, 0
        %1622 = vmatprep.subr.mxu0 0.0
        %1623 = vmatpush1.xpose.msra.mxu0 %v1611
        %1624 = vmatprep.subr.mxu0 0.0
        %1625 = vmatpush1.xpose.msra.mxu0 %v1614
        %1626 = vmatprep.subr.mxu0 0.0
        %1627 = vmatpush1.xpose.msra.mxu0 %v1617
        %1628 = vmatprep.subr.mxu0 0.0
        %1629 = vmatpush1.xpose.msra.mxu0 %v1620
        %1630 = vmatprep.subr.mxu0 0.0
        %1631 = vmatpush1.xpose.msra.mxu0 0.0
        %1632 = vmatprep.subr.mxu0 0.0
        %1633 = vmatpush1.xpose.msra.mxu0 0.0
        %1634 = vmatprep.subr.mxu0 0.0
        %1635 = vmatpush1.xpose.msra.mxu0 0.0
        %1636 = vmatprep.subr.mxu0 0.0
        %1637 = vmatpush1.xpose.msra.mxu0 0.0
        %1638 = vmatprep.subr.mxu0 0.0
        %1639 = vmatpush1.xpose.msra.mxu0 0.0
        %1640 = vmatprep.subr.mxu0 0.0
        %1641 = vmatpush1.xpose.msra.mxu0 0.0
        %1642 = vmatprep.subr.mxu0 0.0
        %1643 = vmatpush1.xpose.msra.mxu0 0.0
        %1644 = vmatprep.subr.mxu0 0.0
        %1645 = vmatpush1.xpose.msra.mxu0 0.0
        %1646 = vmatprep.subr.mxu0 0.0
        %1647 = vmatpush1.xpose.msra.mxu0 0.0
        %1648 = vmatprep.subr.mxu0 0.0
        %1649 = vmatpush1.xpose.msra.mxu0 0.0
        %1650 = vmatprep.subr.mxu0 0.0
        %1651 = vmatpush1.xpose.msra.mxu0 0.0
        %1652 = vmatprep.subr.mxu0 0.0
        %1653 = vmatpush1.xpose.msra.mxu0 0.0
        %1654 = vmatprep.subr.mxu0 0.0
        %1655 = vmatpush1.xpose.msra.mxu0 0.0
        %1656 = vmatprep.subr.mxu0 0.0
        %1657 = vmatpush1.xpose.msra.mxu0 0.0
        %1658 = vmatprep.subr.mxu0 0.0
        %1659 = vmatpush1.xpose.msra.mxu0 0.0
        %1660 = vmatprep.subr.mxu0 0.0
        %1661 = vmatpush1.xpose.msra.mxu0 0.0
        %1662 = vmatprep.subr.mxu0 0.0
        %1663 = vmatpush1.xpose.msra.mxu0 0.0
        %1664 = vmatprep.subr.mxu0 0.0
        %1665 = vmatpush1.xpose.msra.mxu0 0.0
        %1666 = vmatprep.subr.mxu0 0.0
        %1667 = vmatpush1.xpose.msra.mxu0 0.0
        %1668 = vmatprep.subr.mxu0 0.0
        %1669 = vmatpush1.xpose.msra.mxu0 0.0
        %1670 = vmatprep.subr.mxu0 0.0
        %1671 = vmatpush1.xpose.msra.mxu0 0.0
        %1672 = vmatprep.subr.mxu0 0.0
        %1673 = vmatpush1.xpose.msra.mxu0 0.0
        %1674 = vmatprep.subr.mxu0 0.0
        %1675 = vmatpush1.xpose.msra.mxu0 0.0
        %1676 = vmatprep.subr.mxu0 0.0
        %1677 = vmatpush1.xpose.msra.mxu0 0.0
        %1678 = vmatprep.subr.mxu0 0.0
        %1679 = vmatpush1.xpose.msra.mxu0 0.0
        %1680 = vmatprep.subr.mxu0 0.0
        %1681 = vmatpush1.xpose.msra.mxu0 0.0
        %1682 = vmatprep.subr.mxu0 0.0
        %1683 = vmatpush1.xpose.msra.mxu0 0.0
        %1684 = vmatprep.subr.mxu0 0.0
        %1685 = vmatpush1.xpose.msra.mxu0 0.0
        %1686 = vmatprep.mubr.f32.mxu0 0.0
        %1687 = vmatmul.mubr.f32.gmra.mrb[0].mxu0 %v1608
        %v1688 = vpop.f32.mrb[0].mxu0
        %v1689 = vadd.f32 %v1605, %v1688
        %v1690 = vpop.f32.mrb[0].mxu0
        %1691 = vdwg.mxu0
        %1692 = vst.msk [vmem:[%s611] sm:$0xff] %vm633, %v1689
        %s1693 = sand.u32 %s294, 1
        %s1694 = scalar_lea.sflag [#allocation5], %s1693
        %s1695 = sand.u32 %s294, 1
        %s1696 = smul.addr %s1695, 8
        %s1697 = scalar_lea.vmem [#allocation21], %s1696
        %s1698 = sand.u32 %s320, 1
        %s1699 = scalar_lea.sflag [#allocation23], %s1698
        %s1700 = sand.u32 %s320, 1
        %s1701 = smul.addr %s1700, 32
        %s1702 = scalar_lea.vmem [#allocation22], %s1701
        // Predicated region
        $region109: #{tpu_custom_call.1} parent=63 // pred_check
          %p1703 = pneg %p304
        $region110: #{tpu_custom_call.1} parent=63 // pred_check_branch
          %1705 = sbr.rel (%p1703) target = $region112
        $region111: #{tpu_custom_call.1} parent=63 // pred_region
          %s1707 = ssub.s32 128, 128
          %1708 = vsyncadd %s1694, %s1707
          %s1709 = smul.addr %s40, 128
          %s1710 = scalar_lea.hbm %s11, %s1709
          %s1712 = sshll.u32 %s1697, 4
          %s1713 = int_to_ptr.vmem [resolvable:$true] %s1712
          %1715 = dma.vmem_to_hbm [thread:$0]  %s1713, 128, %s1710, %s1694
        $region112: #{tpu_custom_call.1} parent=63 // pred_fallthru
          _
        // Predicated region
        $region113: #{tpu_custom_call.1} parent=63 // pred_check
          %p1716 = pneg %p330
        $region114: #{tpu_custom_call.1} parent=63 // pred_check_branch
          %1718 = sbr.rel (%p1716) target = $region116
        $region115: #{tpu_custom_call.1} parent=63 // pred_region
          %s1720 = ssub.s32 512, 512
          %1721 = vsyncadd %s1699, %s1720
          %s1722 = smul.addr %s40, 4
          %s1723 = smul.addr %s1722, 128
          %s1724 = scalar_lea.hbm %s12, %s1723
          %s1725 = sshll.u32 %s1702, 4
          %s1726 = int_to_ptr.vmem [resolvable:$true] %s1725
          %1731 = dma.vmem_to_hbm [thread:$0]  %s1726, 512, %s1724, %s1699, 128, 128, 8
        $region116: #{tpu_custom_call.1} parent=63 // pred_fallthru
          _
      $region64: #{tpu_custom_call.1} parent=5 // pred_fallthru
        _
      %p1732 = scmp.le.s32.totalorder 2, %s35
      // Predicated region
      $region117: #{tpu_custom_call.1} parent=5 // pred_check
        %p1733 = pneg %p1732
      $region118: #{tpu_custom_call.1} parent=5 // pred_check_branch
        %1735 = sbr.rel (%p1733) target = $region120
      $region119: #{tpu_custom_call.1} parent=5 // pred_region
        %s1736 = ssub.s32 %s35, 2
        // Predicated region
        $region121: #{tpu_custom_call.1} parent=119 // pred_check
          %p1737 = pneg %p310
        $region122: #{tpu_custom_call.1} parent=119 // pred_check_branch
          %1739 = sbr.rel (%p1737) target = $region124
        $region123: #{tpu_custom_call.1} parent=119 // pred_region
          %s1740 = sand.u32 %s295, 1
          %s1741 = scalar_lea.sflag [#allocation5], %s1740
          %s1742 = sand.u32 %s295, 1
          %s1743 = smul.addr %s1742, 8
          %s1744 = scalar_lea.vmem [#allocation21], %s1743
          %1745 = dma.done %s1741, 128
        $region124: #{tpu_custom_call.1} parent=119 // pred_fallthru
          _
        // Predicated region
        $region125: #{tpu_custom_call.1} parent=119 // pred_check
          %p1746 = pneg %p336
        $region126: #{tpu_custom_call.1} parent=119 // pred_check_branch
          %1748 = sbr.rel (%p1746) target = $region128
        $region127: #{tpu_custom_call.1} parent=119 // pred_region
          %s1749 = sand.u32 %s321, 1
          %s1750 = scalar_lea.sflag [#allocation23], %s1749
          %s1751 = sand.u32 %s321, 1
          %s1752 = smul.addr %s1751, 32
          %s1753 = scalar_lea.vmem [#allocation22], %s1752
          %1754 = dma.done %s1750, 512
        $region128: #{tpu_custom_call.1} parent=119 // pred_fallthru
          _
      $region120: #{tpu_custom_call.1} parent=5 // pred_fallthru
        _
    $region6: #{tpu_custom_call.1} parent=1 // loop_footer
      %s39 = sadd.s32 1, %s35
    $region7: #{tpu_custom_call.1} parent=1 // loop_footer_branch
      %34 = sbr.rel target = $region3
    $region8: #{tpu_custom_call.1} parent=1 // loop_exit
      _
    %1755 = vsyncpa [#allocation4], 1
    %s1756 = scalar_lea.sflag [#allocation4], 1
    %1757 = vsyncpa %s1756, 1
    %1758 = vsyncpa [#allocation7], 1
    %s1759 = scalar_lea.sflag [#allocation7], 1
    %1760 = vsyncpa %s1759, 1
    %1761 = vsyncpa [#allocation10], 1
    %1762 = vsyncpa [#allocation13], 1
    %1763 = vsyncpa [#allocation16], 1
    %1764 = vsyncpa [#allocation19], 1
    %1765 = vsyncpa [#allocation5], 1
    %s1766 = scalar_lea.sflag [#allocation5], 1
    %1767 = vsyncpa %s1766, 1
    %1768 = vsyncpa [#allocation23], 1
    %s1769 = scalar_lea.sflag [#allocation23], 1
    %1770 = vsyncpa %s1769, 1

</llo_original>
